<compile_context>
chip_gen: v7x
topology: tpu7x:2x2x1
jax: 0.10.0
libtpu: 0.0.40
codegen_flags: <defaults>
</compile_context>

<pallas_src>
import jax
import jax.numpy as jnp
from jax.experimental import pallas as pl
from jax.experimental.pallas import tpu as pltpu


def _make_kernel(n_hidden):
    """Kernel for `n_hidden` (conv1x1 + PReLU) layers + final conv1x1.

    Ref layout (channels on sublanes, pixels on lanes):
      alphas_ref : SMEM (max(1, n_hidden),) f32  -- PReLU slope per hidden layer
      x_ref      : VMEM (1, C_in, tile_p)
      per hidden layer l : w_l (C_l, C_{l-1}), b_l (C_l, 1)
      w_out (C_out, C_last), b_out (C_out, 1)
      o_ref      : VMEM (1, C_out, tile_p)
    """

    def kernel(alphas_ref, *refs):
        x_ref = refs[0]
        o_ref = refs[-1]
        h = x_ref[0].astype(jnp.float32)                     # (C_in, tile_p)
        idx = 1
        for layer in range(n_hidden):
            w = refs[idx][...]                               # (C_l, C_{l-1})
            b = refs[idx + 1][...]                           # (C_l, 1)
            idx += 2
            h = jnp.dot(w, h, preferred_element_type=jnp.float32) + b
            a = alphas_ref[layer]                            # scalar (SMEM)
            h = jnp.where(h > 0, h, a * h)                   # PReLU
        w = refs[idx][...]
        b = refs[idx + 1][...]
        h = jnp.dot(w, h, preferred_element_type=jnp.float32) + b
        o_ref[0] = h.astype(o_ref.dtype)

    return kernel


def _round_up(v, m):
    return ((v + m - 1) // m) * m


def conv_decoder_forward(x_nchw, params, *, max_tile_p=None, io_dtype=None):
    """Fused ConvDecoder forward.

    x_nchw     : (N, C_in, H, W)
    params     : dict with
       'hidden': list of (W (Cout,Cin), b (Cout,), alpha scalar)
       'out'   : (W (Cout,Cin), b (Cout,))
    max_tile_p : optional cap on the pixel tile (testing / tuning).
    io_dtype   : optional activation I/O dtype (e.g. jnp.bfloat16); compute
                 stays f32 in-kernel.
    """
    N, C_in, H, W = x_nchw.shape
    hidden = params["hidden"]
    w_out, b_out = params["out"]
    out_dim = w_out.shape[0]
    n_hidden = len(hidden)

    HW = H * W
    out_dtype = io_dtype if io_dtype is not None else x_nchw.dtype
    # Pixels -> lanes, channels -> sublanes.  Pure reshape, no transpose.
    x = x_nchw.reshape(N, C_in, HW)
    if io_dtype is not None:
        x = x.astype(io_dtype)

    # PReLU slopes -> SMEM via scalar prefetch.
    alphas = jnp.asarray(
        [a for (_, _, a) in hidden] if n_hidden > 0 else [0.0], jnp.float32)

    # Weights / biases: full-array blocks, constant index_map (DMA'd once).
    flat_params = []
    for (w, b, _) in hidden:
        flat_params += [w, b.reshape(-1, 1)]
    flat_params += [w_out, b_out.reshape(-1, 1)]
    param_bytes = sum(int(p.size) * p.dtype.itemsize for p in flat_params)

    dims = [C_in] + [w.shape[0] for (w, _, _) in hidden] + [out_dim]
    max_c = max(dims)

    # ---- Generation-aware VMEM budget ----------------------------------
    try:
        vmem_cap = int(pltpu.get_tpu_info().vmem_capacity_bytes)
    except Exception:
        vmem_cap = 64 * 1024 * 1024           # conservative default (v7x)
    # ~48 MiB on 64 MiB parts (v7x), ~96 MiB on 128 MiB parts (v5e/v6e).
    vmem_limit = max(16 * 1024 * 1024,
                     min(int(0.75 * vmem_cap), 100 * 1024 * 1024))

    # ---- Pixel tile derived from per-pixel VMEM cost --------------------
    act_itemsize = jnp.dtype(x.dtype).itemsize
    bytes_per_pixel = (2 * (C_in + out_dim) * act_itemsize   # 2-buffered in/out tiles
                       + 2 * max_c * 4)                      # f32 intermediates
    tile_budget = max(vmem_limit // 2 - 2 * param_bytes, 128 * bytes_per_pixel)
    tile_cap = 131072 if vmem_cap >= 96 * 1024 * 1024 else 32768
    if max_tile_p is not None:
        tile_cap = min(tile_cap, int(max_tile_p))
    tile = min(tile_cap, tile_budget // bytes_per_pixel)
    tile = max(128, (tile // 128) * 128)       # lane-dense: multiple of 128

    if tile >= HW:
        if N == 1 and HW > 128:
            # Keep >= 2 parallel grid steps so both TensorCores (v7x) /
            # megacore halves get work.
            tile = max(128, _round_up(-(-HW // 2), 128))
            if tile >= HW:
                tile = HW                       # full-dim block, can't split
        else:
            tile = HW                           # full-dim block (no padding)
    num_p_tiles = pl.cdiv(HW, tile)             # ragged last block handled by Pallas
    grid = (N, num_p_tiles)

    # Cost estimate (bandwidth-bound: tiny channel counts keep MXU ~idle).
    flops = 2 * N * HW * sum(dims[i] * dims[i + 1] for i in range(len(dims) - 1))
    bytes_accessed = (int(x.size) * act_itemsize
                      + N * out_dim * HW * jnp.dtype(out_dtype).itemsize
                      + param_bytes)
    cost = pl.CostEstimate(flops=int(flops), transcendentals=0,
                           bytes_accessed=int(bytes_accessed))

    def call(single_buffer_params):
        in_specs = [pl.BlockSpec((1, C_in, tile), lambda n, p, *_: (n, 0, p))]
        for prm in flat_params:
            if single_buffer_params:
                spec = pl.BlockSpec(prm.shape, lambda n, p, *_: (0, 0),
                                    pipeline_mode=pl.Buffered(buffer_count=1))
            else:
                spec = pl.BlockSpec(prm.shape, lambda n, p, *_: (0, 0))
            in_specs.append(spec)
        out_spec = pl.BlockSpec((1, out_dim, tile), lambda n, p, *_: (n, 0, p))
        return pl.pallas_call(
            _make_kernel(n_hidden),
            out_shape=jax.ShapeDtypeStruct((N, out_dim, HW), out_dtype),
            grid_spec=pltpu.PrefetchScalarGridSpec(
                num_scalar_prefetch=1,
                grid=grid,
                in_specs=in_specs,
                out_specs=out_spec,
            ),
            compiler_params=pltpu.CompilerParams(
                dimension_semantics=("parallel", "parallel"),
                vmem_limit_bytes=vmem_limit),
            cost_estimate=cost,
        )(alphas, x, *flat_params)

    try:
        out = call(True)        # single-buffered (constant-index) params
    except Exception:
        out = call(False)       # fallback: default double-buffered params

    return out.reshape(N, out_dim, H, W)         # pure reshape, no transpose


def init_conv_decoder(key, in_dim, out_dim, hidden_list):
    """Deterministic synthetic init mirroring the module's parameter shapes.

    Weights are kept in the native PyTorch Conv2d (Cout, Cin) layout.
    """
    params = {"hidden": [], "out": None}
    lastv = in_dim
    for h in hidden_list:
        key, kw, kb = jax.random.split(key, 3)
        w = 0.01 * jax.random.normal(kw, (h, lastv), jnp.float32)   # (Cout, Cin)
        b = 0.01 * jax.random.normal(kb, (h,), jnp.float32)
        alpha = jnp.float32(0.25)                                   # nn.PReLU init
        params["hidden"].append((w, b, alpha))
        lastv = h
    key, kw, kb = jax.random.split(key, 3)
    w = 0.01 * jax.random.normal(kw, (out_dim, lastv), jnp.float32)
    b = 0.01 * jax.random.normal(kb, (out_dim,), jnp.float32)
    params["out"] = (w, b)
    return params


def reference_forward(x_nchw, params):
    """Pure-JAX reference (for sanity check)."""
    N, C, H, W = x_nchw.shape
    h = x_nchw.reshape(N, C, H * W)
    for (w, b, a) in params["hidden"]:
        h = jnp.einsum("oc,ncp->nop", w, h) + b.reshape(1, -1, 1)
        h = jnp.where(h > 0, h, a * h)
    w, b = params["out"]
    h = jnp.einsum("oc,ncp->nop", w, h) + b.reshape(1, -1, 1)
    return h.reshape(N, -1, H, W)


if __name__ == "__main__":
    key = jax.random.PRNGKey(0)

    in_dim, out_dim = 4, 3
    hidden_list = [32, 32]

    # --- case 1: base shapes -------------------------------------------
    N, H, W = 2, 16, 16
    key, kx, kp = jax.random.split(key, 3)
    x = jax.random.normal(kx, (N, in_dim, H, W), jnp.float32)
    params = init_conv_decoder(kp, in_dim, out_dim, hidden_list)
    out = jax.block_until_ready(conv_decoder_forward(x, params))
    ref = reference_forward(x, params)
    assert out.shape == (N, out_dim, H, W), out.shape
    assert jnp.allclose(out, ref, atol=1e-5, rtol=1e-4), "case1 mismatch"

    # --- case 2: ragged pixel count (HW % 128 != 0), forced small tile ---
    N2, H2, W2 = 1, 17, 19                       # HW = 323
    key, kx2, kp2 = jax.random.split(key, 3)
    x2 = jax.random.normal(kx2, (N2, in_dim, H2, W2), jnp.float32)
    params2 = init_conv_decoder(kp2, in_dim, out_dim, [32])
    out2 = jax.block_until_ready(
        conv_decoder_forward(x2, params2, max_tile_p=128))
    ref2 = reference_forward(x2, params2)
    assert out2.shape == (N2, out_dim, H2, W2), out2.shape
    assert jnp.allclose(out2, ref2, atol=1e-5, rtol=1e-4), "case2 mismatch"

    # --- case 3: N == 1 auto-tile path (>= 2 grid steps kept, ragged edge) ---
    out3 = jax.block_until_ready(conv_decoder_forward(x2, params2))
    assert jnp.allclose(out3, ref2, atol=1e-5, rtol=1e-4), "case3 mismatch"

    # --- case 4: optional bf16 I/O path (compute stays f32) --------------
    out4 = jax.block_until_ready(
        conv_decoder_forward(x, params, io_dtype=jnp.bfloat16))
    assert out4.shape == (N, out_dim, H, W), out4.shape
    assert bool(jnp.isfinite(out4.astype(jnp.float32)).all()), "case4 non-finite"

    print("KERNEL_OK")
</pallas_src>

<mosaic_0001>
module attributes {stable_mosaic.version = 11 : i64} {
  func.func @kernel(%arg0: i32, %arg1: i32, %arg2: memref<2xf32, #tpu.memory_space<smem>>, %arg3: memref<1x4x256xf32, #tpu.memory_space<vmem>>, %arg4: memref<32x4xf32, #tpu.memory_space<vmem>>, %arg5: memref<32x1xf32, #tpu.memory_space<vmem>>, %arg6: memref<32x32xf32, #tpu.memory_space<vmem>>, %arg7: memref<32x1xf32, #tpu.memory_space<vmem>>, %arg8: memref<3x32xf32, #tpu.memory_space<vmem>>, %arg9: memref<3x1xf32, #tpu.memory_space<vmem>>, %arg10: memref<1x3x256xf32, #tpu.memory_space<vmem>>) attributes {dimension_semantics = [#tpu.dimension_semantics<parallel>, #tpu.dimension_semantics<parallel>], iteration_bounds = array<i64: 2, 1>, scalar_prefetch = 1 : i64, scratch_operands = 0 : i64, tpu.core_type = #tpu.core_type<tc>, window_params = [{transform_indices = @transform_0, window_bounds = array<i64: 1, 4, 256>}, {pipeline_mode = #tpu.pipeline_mode<synchronous>, transform_indices = @transform_1, window_bounds = array<i64: 32, 4>}, {pipeline_mode = #tpu.pipeline_mode<synchronous>, transform_indices = @transform_2, window_bounds = array<i64: 32, 1>}, {pipeline_mode = #tpu.pipeline_mode<synchronous>, transform_indices = @transform_3, window_bounds = array<i64: 32, 32>}, {pipeline_mode = #tpu.pipeline_mode<synchronous>, transform_indices = @transform_4, window_bounds = array<i64: 32, 1>}, {pipeline_mode = #tpu.pipeline_mode<synchronous>, transform_indices = @transform_5, window_bounds = array<i64: 3, 32>}, {pipeline_mode = #tpu.pipeline_mode<synchronous>, transform_indices = @transform_6, window_bounds = array<i64: 3, 1>}, {transform_indices = @transform_7, window_bounds = array<i64: 1, 3, 256>}]} {
    %c0 = arith.constant 0 : index
    %c0_0 = arith.constant 0 : index
    %c0_1 = arith.constant 0 : index
    %0 = vector.load %arg3[%c0, %c0_0, %c0_1] : memref<1x4x256xf32, #tpu.memory_space<vmem>>, vector<1x4x256xf32>
    %1 = vector.shape_cast %0 : vector<1x4x256xf32> to vector<4x256xf32>
    %c0_2 = arith.constant 0 : index
    %c0_3 = arith.constant 0 : index
    %2 = vector.load %arg4[%c0_2, %c0_3] : memref<32x4xf32, #tpu.memory_space<vmem>>, vector<32x4xf32>
    %c0_4 = arith.constant 0 : index
    %c0_5 = arith.constant 0 : index
    %3 = vector.load %arg5[%c0_4, %c0_5] : memref<32x1xf32, #tpu.memory_space<vmem>>, vector<32x1xf32>
    %cst = arith.constant dense<0.000000e+00> : vector<32x256xf32>
    %4 = tpu.matmul %2, %1, %cst {dimension_numbers = #tpu.dot_dimension_numbers<[1], [0], [0], [1], [0, 0, 1, 1], [], []>} : vector<32x4xf32>, vector<4x256xf32>, vector<32x256xf32> -> vector<32x256xf32>
    %5 = vector.broadcast %3 : vector<32x1xf32> to vector<32x256xf32>
    %6 = arith.addf %4, %5 : vector<32x256xf32>
    %c0_6 = arith.constant 0 : index
    %7 = memref.load %arg2[%c0_6] : memref<2xf32, #tpu.memory_space<smem>>
    %cst_7 = arith.constant 0.000000e+00 : f32
    %8 = vector.broadcast %cst_7 : f32 to vector<32x256xf32>
    %9 = arith.cmpf ogt, %6, %8 : vector<32x256xf32>
    %10 = vector.broadcast %7 : f32 to vector<32x256xf32>
    %11 = arith.mulf %10, %6 : vector<32x256xf32>
    %12 = arith.select %9, %6, %11 : vector<32x256xi1>, vector<32x256xf32>
    %c0_8 = arith.constant 0 : index
    %c0_9 = arith.constant 0 : index
    %13 = vector.load %arg6[%c0_8, %c0_9] : memref<32x32xf32, #tpu.memory_space<vmem>>, vector<32x32xf32>
    %c0_10 = arith.constant 0 : index
    %c0_11 = arith.constant 0 : index
    %14 = vector.load %arg7[%c0_10, %c0_11] : memref<32x1xf32, #tpu.memory_space<vmem>>, vector<32x1xf32>
    %cst_12 = arith.constant dense<0.000000e+00> : vector<32x256xf32>
    %15 = tpu.matmul %13, %12, %cst_12 {dimension_numbers = #tpu.dot_dimension_numbers<[1], [0], [0], [1], [0, 0, 1, 1], [], []>} : vector<32x32xf32>, vector<32x256xf32>, vector<32x256xf32> -> vector<32x256xf32>
    %16 = vector.broadcast %14 : vector<32x1xf32> to vector<32x256xf32>
    %17 = arith.addf %15, %16 : vector<32x256xf32>
    %c1 = arith.constant 1 : index
    %18 = memref.load %arg2[%c1] : memref<2xf32, #tpu.memory_space<smem>>
    %cst_13 = arith.constant 0.000000e+00 : f32
    %19 = vector.broadcast %cst_13 : f32 to vector<32x256xf32>
    %20 = arith.cmpf ogt, %17, %19 : vector<32x256xf32>
    %21 = vector.broadcast %18 : f32 to vector<32x256xf32>
    %22 = arith.mulf %21, %17 : vector<32x256xf32>
    %23 = arith.select %20, %17, %22 : vector<32x256xi1>, vector<32x256xf32>
    %c0_14 = arith.constant 0 : index
    %c0_15 = arith.constant 0 : index
    %24 = vector.load %arg8[%c0_14, %c0_15] : memref<3x32xf32, #tpu.memory_space<vmem>>, vector<3x32xf32>
    %c0_16 = arith.constant 0 : index
    %c0_17 = arith.constant 0 : index
    %25 = vector.load %arg9[%c0_16, %c0_17] : memref<3x1xf32, #tpu.memory_space<vmem>>, vector<3x1xf32>
    %cst_18 = arith.constant dense<0.000000e+00> : vector<3x256xf32>
    %26 = tpu.matmul %24, %23, %cst_18 {dimension_numbers = #tpu.dot_dimension_numbers<[1], [0], [0], [1], [0, 0, 1, 1], [], []>} : vector<3x32xf32>, vector<32x256xf32>, vector<3x256xf32> -> vector<3x256xf32>
    %27 = vector.broadcast %25 : vector<3x1xf32> to vector<3x256xf32>
    %28 = arith.addf %26, %27 : vector<3x256xf32>
    %c0_19 = arith.constant 0 : index
    %c0_20 = arith.constant 0 : index
    %c0_21 = arith.constant 0 : index
    %29 = vector.load %arg10[%c0_19, %c0_20, %c0_21] : memref<1x3x256xf32, #tpu.memory_space<vmem>>, vector<1x3x256xf32>
    %30 = vector.shape_cast %29 : vector<1x3x256xf32> to vector<3x256xf32>
    %31 = vector.shape_cast %28 : vector<3x256xf32> to vector<1x3x256xf32>
    tpu.vector_store %arg10[%c0_19, %c0_20, %c0_21], %31 {strides = array<i32>} : memref<1x3x256xf32, #tpu.memory_space<vmem>>, vector<1x3x256xf32>,
    return
  }
  func.func @transform_0(%arg0: i32, %arg1: i32, %arg2: memref<2xf32, #tpu.memory_space<smem>>) -> (i32, i32, i32) {
    %c0_i32 = arith.constant 0 : i32
    %c0_i32_0 = arith.constant 0 : i32
    return %arg0, %c0_i32, %arg1 : i32, i32, i32
  }
  func.func @transform_1(%arg0: i32, %arg1: i32, %arg2: memref<2xf32, #tpu.memory_space<smem>>) -> (i32, i32) {
    %c0_i32 = arith.constant 0 : i32
    %c0_i32_0 = arith.constant 0 : i32
    %c0_i32_1 = arith.constant 0 : i32
    return %c0_i32, %c0_i32_0 : i32, i32
  }
  func.func @transform_2(%arg0: i32, %arg1: i32, %arg2: memref<2xf32, #tpu.memory_space<smem>>) -> (i32, i32) {
    %c0_i32 = arith.constant 0 : i32
    %c0_i32_0 = arith.constant 0 : i32
    %c0_i32_1 = arith.constant 0 : i32
    return %c0_i32, %c0_i32_0 : i32, i32
  }
  func.func @transform_3(%arg0: i32, %arg1: i32, %arg2: memref<2xf32, #tpu.memory_space<smem>>) -> (i32, i32) {
    %c0_i32 = arith.constant 0 : i32
    %c0_i32_0 = arith.constant 0 : i32
    %c0_i32_1 = arith.constant 0 : i32
    return %c0_i32, %c0_i32_0 : i32, i32
  }
  func.func @transform_4(%arg0: i32, %arg1: i32, %arg2: memref<2xf32, #tpu.memory_space<smem>>) -> (i32, i32) {
    %c0_i32 = arith.constant 0 : i32
    %c0_i32_0 = arith.constant 0 : i32
    %c0_i32_1 = arith.constant 0 : i32
    return %c0_i32, %c0_i32_0 : i32, i32
  }
  func.func @transform_5(%arg0: i32, %arg1: i32, %arg2: memref<2xf32, #tpu.memory_space<smem>>) -> (i32, i32) {
    %c0_i32 = arith.constant 0 : i32
    %c0_i32_0 = arith.constant 0 : i32
    %c0_i32_1 = arith.constant 0 : i32
    return %c0_i32, %c0_i32_0 : i32, i32
  }
  func.func @transform_6(%arg0: i32, %arg1: i32, %arg2: memref<2xf32, #tpu.memory_space<smem>>) -> (i32, i32) {
    %c0_i32 = arith.constant 0 : i32
    %c0_i32_0 = arith.constant 0 : i32
    %c0_i32_1 = arith.constant 0 : i32
    return %c0_i32, %c0_i32_0 : i32, i32
  }
  func.func @transform_7(%arg0: i32, %arg1: i32, %arg2: memref<2xf32, #tpu.memory_space<smem>>) -> (i32, i32, i32) {
    %c0_i32 = arith.constant 0 : i32
    %c0_i32_0 = arith.constant 0 : i32
    return %arg0, %c0_i32, %arg1 : i32, i32, i32
  }
}

module attributes {stable_mosaic.version = 11 : i64} {
  func.func @kernel(%arg0: i32, %arg1: i32, %arg2: memref<2xf32, #tpu.memory_space<smem>>, %arg3: memref<1x4x256xf32, #tpu.memory_space<vmem>>, %arg4: memref<32x4xf32, #tpu.memory_space<vmem>>, %arg5: memref<32x1xf32, #tpu.memory_space<vmem>>, %arg6: memref<32x32xf32, #tpu.memory_space<vmem>>, %arg7: memref<32x1xf32, #tpu.memory_space<vmem>>, %arg8: memref<3x32xf32, #tpu.memory_space<vmem>>, %arg9: memref<3x1xf32, #tpu.memory_space<vmem>>, %arg10: memref<1x3x256xf32, #tpu.memory_space<vmem>>) attributes {dimension_semantics = [#tpu.dimension_semantics<parallel>, #tpu.dimension_semantics<parallel>], iteration_bounds = array<i64: 2, 1>, scalar_prefetch = 1 : i64, scratch_operands = 0 : i64, tpu.core_type = #tpu.core_type<tc>, window_params = [{transform_indices = @transform_0, window_bounds = array<i64: 1, 4, 256>}, {pipeline_mode = #tpu.pipeline_mode<synchronous>, transform_indices = @transform_1, window_bounds = array<i64: 32, 4>}, {pipeline_mode = #tpu.pipeline_mode<synchronous>, transform_indices = @transform_2, window_bounds = array<i64: 32, 1>}, {pipeline_mode = #tpu.pipeline_mode<synchronous>, transform_indices = @transform_3, window_bounds = array<i64: 32, 32>}, {pipeline_mode = #tpu.pipeline_mode<synchronous>, transform_indices = @transform_4, window_bounds = array<i64: 32, 1>}, {pipeline_mode = #tpu.pipeline_mode<synchronous>, transform_indices = @transform_5, window_bounds = array<i64: 3, 32>}, {pipeline_mode = #tpu.pipeline_mode<synchronous>, transform_indices = @transform_6, window_bounds = array<i64: 3, 1>}, {transform_indices = @transform_7, window_bounds = array<i64: 1, 3, 256>}]} {
    %c0 = arith.constant 0 : index
    %c0_0 = arith.constant 0 : index
    %c0_1 = arith.constant 0 : index
    %0 = vector.load %arg3[%c0, %c0_0, %c0_1] : memref<1x4x256xf32, #tpu.memory_space<vmem>>, vector<1x4x256xf32>
    %1 = vector.shape_cast %0 : vector<1x4x256xf32> to vector<4x256xf32>
    %c0_2 = arith.constant 0 : index
    %c0_3 = arith.constant 0 : index
    %2 = vector.load %arg4[%c0_2, %c0_3] : memref<32x4xf32, #tpu.memory_space<vmem>>, vector<32x4xf32>
    %c0_4 = arith.constant 0 : index
    %c0_5 = arith.constant 0 : index
    %3 = vector.load %arg5[%c0_4, %c0_5] : memref<32x1xf32, #tpu.memory_space<vmem>>, vector<32x1xf32>
    %cst = arith.constant dense<0.000000e+00> : vector<32x256xf32>
    %4 = tpu.matmul %2, %1, %cst {dimension_numbers = #tpu.dot_dimension_numbers<[1], [0], [0], [1], [0, 0, 1, 1], [], []>} : vector<32x4xf32>, vector<4x256xf32>, vector<32x256xf32> -> vector<32x256xf32>
    %5 = vector.broadcast %3 : vector<32x1xf32> to vector<32x256xf32>
    %6 = arith.addf %4, %5 : vector<32x256xf32>
    %c0_6 = arith.constant 0 : index
    %7 = memref.load %arg2[%c0_6] : memref<2xf32, #tpu.memory_space<smem>>
    %cst_7 = arith.constant 0.000000e+00 : f32
    %8 = vector.broadcast %cst_7 : f32 to vector<32x256xf32>
    %9 = arith.cmpf ogt, %6, %8 : vector<32x256xf32>
    %10 = vector.broadcast %7 : f32 to vector<32x256xf32>
    %11 = arith.mulf %10, %6 : vector<32x256xf32>
    %12 = arith.select %9, %6, %11 : vector<32x256xi1>, vector<32x256xf32>
    %c0_8 = arith.constant 0 : index
    %c0_9 = arith.constant 0 : index
    %13 = vector.load %arg6[%c0_8, %c0_9] : memref<32x32xf32, #tpu.memory_space<vmem>>, vector<32x32xf32>
    %c0_10 = arith.constant 0 : index
    %c0_11 = arith.constant 0 : index
    %14 = vector.load %arg7[%c0_10, %c0_11] : memref<32x1xf32, #tpu.memory_space<vmem>>, vector<32x1xf32>
    %cst_12 = arith.constant dense<0.000000e+00> : vector<32x256xf32>
    %15 = tpu.matmul %13, %12, %cst_12 {dimension_numbers = #tpu.dot_dimension_numbers<[1], [0], [0], [1], [0, 0, 1, 1], [], []>} : vector<32x32xf32>, vector<32x256xf32>, vector<32x256xf32> -> vector<32x256xf32>
    %16 = vector.broadcast %14 : vector<32x1xf32> to vector<32x256xf32>
    %17 = arith.addf %15, %16 : vector<32x256xf32>
    %c1 = arith.constant 1 : index
    %18 = memref.load %arg2[%c1] : memref<2xf32, #tpu.memory_space<smem>>
    %cst_13 = arith.constant 0.000000e+00 : f32
    %19 = vector.broadcast %cst_13 : f32 to vector<32x256xf32>
    %20 = arith.cmpf ogt, %17, %19 : vector<32x256xf32>
    %21 = vector.broadcast %18 : f32 to vector<32x256xf32>
    %22 = arith.mulf %21, %17 : vector<32x256xf32>
    %23 = arith.select %20, %17, %22 : vector<32x256xi1>, vector<32x256xf32>
    %c0_14 = arith.constant 0 : index
    %c0_15 = arith.constant 0 : index
    %24 = vector.load %arg8[%c0_14, %c0_15] : memref<3x32xf32, #tpu.memory_space<vmem>>, vector<3x32xf32>
    %c0_16 = arith.constant 0 : index
    %c0_17 = arith.constant 0 : index
    %25 = vector.load %arg9[%c0_16, %c0_17] : memref<3x1xf32, #tpu.memory_space<vmem>>, vector<3x1xf32>
    %cst_18 = arith.constant dense<0.000000e+00> : vector<3x256xf32>
    %26 = tpu.matmul %24, %23, %cst_18 {dimension_numbers = #tpu.dot_dimension_numbers<[1], [0], [0], [1], [0, 0, 1, 1], [], []>} : vector<3x32xf32>, vector<32x256xf32>, vector<3x256xf32> -> vector<3x256xf32>
    %27 = vector.broadcast %25 : vector<3x1xf32> to vector<3x256xf32>
    %28 = arith.addf %26, %27 : vector<3x256xf32>
    %c0_19 = arith.constant 0 : index
    %c0_20 = arith.constant 0 : index
    %c0_21 = arith.constant 0 : index
    %29 = vector.load %arg10[%c0_19, %c0_20, %c0_21] : memref<1x3x256xf32, #tpu.memory_space<vmem>>, vector<1x3x256xf32>
    %30 = vector.shape_cast %29 : vector<1x3x256xf32> to vector<3x256xf32>
    %31 = vector.shape_cast %28 : vector<3x256xf32> to vector<1x3x256xf32>
    tpu.vector_store %arg10[%c0_19, %c0_20, %c0_21], %31 {strides = array<i32>} : memref<1x3x256xf32, #tpu.memory_space<vmem>>, vector<1x3x256xf32>,
    return
  }
  func.func @transform_0(%arg0: i32, %arg1: i32, %arg2: memref<2xf32, #tpu.memory_space<smem>>) -> (i32, i32, i32) {
    %c0_i32 = arith.constant 0 : i32
    %c0_i32_0 = arith.constant 0 : i32
    return %arg0, %c0_i32, %arg1 : i32, i32, i32
  }
  func.func @transform_1(%arg0: i32, %arg1: i32, %arg2: memref<2xf32, #tpu.memory_space<smem>>) -> (i32, i32) {
    %c0_i32 = arith.constant 0 : i32
    %c0_i32_0 = arith.constant 0 : i32
    %c0_i32_1 = arith.constant 0 : i32
    return %c0_i32, %c0_i32_0 : i32, i32
  }
  func.func @transform_2(%arg0: i32, %arg1: i32, %arg2: memref<2xf32, #tpu.memory_space<smem>>) -> (i32, i32) {
    %c0_i32 = arith.constant 0 : i32
    %c0_i32_0 = arith.constant 0 : i32
    %c0_i32_1 = arith.constant 0 : i32
    return %c0_i32, %c0_i32_0 : i32, i32
  }
  func.func @transform_3(%arg0: i32, %arg1: i32, %arg2: memref<2xf32, #tpu.memory_space<smem>>) -> (i32, i32) {
    %c0_i32 = arith.constant 0 : i32
    %c0_i32_0 = arith.constant 0 : i32
    %c0_i32_1 = arith.constant 0 : i32
    return %c0_i32, %c0_i32_0 : i32, i32
  }
  func.func @transform_4(%arg0: i32, %arg1: i32, %arg2: memref<2xf32, #tpu.memory_space<smem>>) -> (i32, i32) {
    %c0_i32 = arith.constant 0 : i32
    %c0_i32_0 = arith.constant 0 : i32
    %c0_i32_1 = arith.constant 0 : i32
    return %c0_i32, %c0_i32_0 : i32, i32
  }
  func.func @transform_5(%arg0: i32, %arg1: i32, %arg2: memref<2xf32, #tpu.memory_space<smem>>) -> (i32, i32) {
    %c0_i32 = arith.constant 0 : i32
    %c0_i32_0 = arith.constant 0 : i32
    %c0_i32_1 = arith.constant 0 : i32
    return %c0_i32, %c0_i32_0 : i32, i32
  }
  func.func @transform_6(%arg0: i32, %arg1: i32, %arg2: memref<2xf32, #tpu.memory_space<smem>>) -> (i32, i32) {
    %c0_i32 = arith.constant 0 : i32
    %c0_i32_0 = arith.constant 0 : i32
    %c0_i32_1 = arith.constant 0 : i32
    return %c0_i32, %c0_i32_0 : i32, i32
  }
  func.func @transform_7(%arg0: i32, %arg1: i32, %arg2: memref<2xf32, #tpu.memory_space<smem>>) -> (i32, i32, i32) {
    %c0_i32 = arith.constant 0 : i32
    %c0_i32_0 = arith.constant 0 : i32
    return %arg0, %c0_i32, %arg1 : i32, i32, i32
  }
}

</mosaic_0001>

<llo_original>
// kernel: tpu_custom_call.1
$region0: #{tpu_custom_call.1}
  #allocation0 [shape = 'u32[]', space=smem, size = 0x4, offset = 0x4, fixed_abs, tag = 'smem constant byte address 0x4 - core index']
  #allocation1 [shape = 'u32[144,128]{1,0:T(1,128)}', space=vmem, size = 0x12000, scoped, tag = 'internal scratch']
  #allocation2 [shape = 's32[1]{0}', space=sflag, size = 0x4, scoped, tag = 'scoped memory for tpu_custom_call.1']
  #allocation3 [shape = 'u8[512]{0}', space=smem, size = 0x200, scoped, tag = 'prefetched SMEM operand 0']
  %s0 = inlined_call_operand.vmem [shape: f32[2], index: 0, kind: input, shape index: {}]
  %s1 = inlined_call_operand.vmem [shape: f32[2,4,256], index: 1, kind: input, shape index: {}]
  %s2 = inlined_call_operand.vmem [shape: f32[32,4], index: 2, kind: input, shape index: {}]
  %s3 = inlined_call_operand.vmem [shape: f32[32,1], index: 3, kind: input, shape index: {}]
  %s4 = inlined_call_operand.vmem [shape: f32[32,32], index: 4, kind: input, shape index: {}]
  %s5 = inlined_call_operand.vmem [shape: f32[32,1], index: 5, kind: input, shape index: {}]
  %s6 = inlined_call_operand.vmem [shape: f32[3,32], index: 6, kind: input, shape index: {}]
  %s7 = inlined_call_operand.vmem [shape: f32[3,1], index: 7, kind: input, shape index: {}]
  %s8 = inlined_call_operand.vmem [shape: f32[2,3,256], index: 8, kind: output, shape index: {}]
  %s9 = sld [smem:[#allocation0]]
  $region61: #{tpu_custom_call.1} parent=0
    _
  %s11 = ssub.s32 1, %s9
  %s12 = scalar_select 0, %s11, %s9
  %s13 = sshll.u32 %s0, 4
  %s14 = int_to_ptr.vmem [resolvable:$true] %s13
  %16 = dma.vmem_to_smem %s14, 16, [#allocation3], [#allocation2]
  %17 = dma.done [#allocation2], 16
  %18 = sfence
  loop: start=0, step=1, limit=4
  $region2: #{tpu_custom_call.1} parent=0 // loop_pre_header
    _
  $region3: #{tpu_custom_call.1} parent=0 // loop_header
    %s20 = sphi 0, %s24
    %p21 = scmp.ge.s32.totalorder %s20, 4
    %s27 = sphi 0, %s39
    %s28 = sphi 0, %s35
    %s29 = sphi 0, %s27
    %s30 = sphi 0, %s28
    %s31 = sphi 0, %s29
    %s32 = sphi 0, %s30
    %s44 = sphi 0, %s46
    %s47 = sphi 0, %s44
    %s48 = sphi 0, %s47
    %s64 = sphi 0, %s48
    %s68 = sphi 0, %s68
    %s70 = sphi 0, %s68
    %s71 = sphi 0, %s70
    %s85 = sphi 0, %s71
    %s89 = sphi 0, %s89
    %s91 = sphi 0, %s89
    %s92 = sphi 0, %s91
    %s106 = sphi 0, %s92
    %s110 = sphi 0, %s110
    %s112 = sphi 0, %s110
    %s113 = sphi 0, %s112
    %s127 = sphi 0, %s113
    %s131 = sphi 0, %s131
    %s133 = sphi 0, %s131
    %s134 = sphi 0, %s133
    %s148 = sphi 0, %s134
    %s152 = sphi 0, %s152
    %s154 = sphi 0, %s152
    %s155 = sphi 0, %s154
    %s169 = sphi 0, %s155
    %s173 = sphi 0, %s173
    %s175 = sphi 0, %s173
    %s176 = sphi 0, %s175
    %s190 = sphi 0, %s176
    %s198 = sphi 0, %s200
    %s201 = sphi 0, %s198
    %s202 = sphi 0, %s201
    %s218 = sphi 0, %s202
  $region4: #{tpu_custom_call.1} parent=0 // loop_header_branch
    %23 = sbr.rel (%p21) target = $region8
  $region5: #{tpu_custom_call.1} parent=0 // loop_body
    %s25 = ssub.s32 %s20, 1
    %s26 = ssub.s32 %s20, 2
    %s33 = sadd.s32 1, %s28
    %p34 = scmp.ge.s32.totalorder %s33, 1
    %s35 = scalar_select %p34, 0, %s33
    %s36 = sadd.s32 1, %s27
    %s37 = scalar_select %p34, %s36, %s27
    %p38 = scmp.ge.s32.totalorder %s37, 2
    %s39 = scalar_select %p38, 0, %s37
    %s40 = ssub.s32 %s27, %s39
    %s41 = ssub.s32 %s28, %s35
    %s42 = sor.u32 %s40, %s41
    %p43 = scmp.eq.s32.totalorder %s42, 0
    %s45 = sadd.s32 %s44, 1
    %s46 = scalar_select %p43, %s44, %s45
    %p49 = pneg %p43
    %p50 = scmp.eq.s32.totalorder %s20, 1
    %p51 = por %p49, %p50
    %p52 = scmp.ne.s32.totalorder %s44, %s47
    %p53 = scmp.eq.s32.totalorder %s20, 0
    %p54 = por %p52, %p53
    %p55 = scmp.ne.s32.totalorder %s44, %s47
    %p56 = scmp.eq.s32.totalorder %s25, 1
    %p57 = por %p55, %p56
    %p58 = scmp.ne.s32.totalorder %s47, %s48
    %p59 = scmp.eq.s32.totalorder %s25, 0
    %p60 = por %p58, %p59
    %p61 = scmp.ne.s32.totalorder %s47, %s48
    %p62 = scmp.eq.s32.totalorder %s26, 1
    %p63 = por %p61, %p62
    %p65 = scmp.ne.s32.totalorder %s48, %s64
    %p66 = scmp.eq.s32.totalorder %s26, 0
    %p67 = por %p65, %p66
    %s69 = sadd.s32 %s68, 1
    %p72 = scmp.eq.s32.totalorder %s20, 1
    %p73 = scmp.ne.s32.totalorder %s68, %s70
    %p74 = scmp.eq.s32.totalorder %s20, 0
    %p75 = por %p73, %p74
    %p76 = scmp.ne.s32.totalorder %s68, %s70
    %p77 = scmp.eq.s32.totalorder %s25, 1
    %p78 = por %p76, %p77
    %p79 = scmp.ne.s32.totalorder %s70, %s71
    %p80 = scmp.eq.s32.totalorder %s25, 0
    %p81 = por %p79, %p80
    %p82 = scmp.ne.s32.totalorder %s70, %s71
    %p83 = scmp.eq.s32.totalorder %s26, 1
    %p84 = por %p82, %p83
    %p86 = scmp.ne.s32.totalorder %s71, %s85
    %p87 = scmp.eq.s32.totalorder %s26, 0
    %p88 = por %p86, %p87
    %s90 = sadd.s32 %s89, 1
    %p93 = scmp.eq.s32.totalorder %s20, 1
    %p94 = scmp.ne.s32.totalorder %s89, %s91
    %p95 = scmp.eq.s32.totalorder %s20, 0
    %p96 = por %p94, %p95
    %p97 = scmp.ne.s32.totalorder %s89, %s91
    %p98 = scmp.eq.s32.totalorder %s25, 1
    %p99 = por %p97, %p98
    %p100 = scmp.ne.s32.totalorder %s91, %s92
    %p101 = scmp.eq.s32.totalorder %s25, 0
    %p102 = por %p100, %p101
    %p103 = scmp.ne.s32.totalorder %s91, %s92
    %p104 = scmp.eq.s32.totalorder %s26, 1
    %p105 = por %p103, %p104
    %p107 = scmp.ne.s32.totalorder %s92, %s106
    %p108 = scmp.eq.s32.totalorder %s26, 0
    %p109 = por %p107, %p108
    %s111 = sadd.s32 %s110, 1
    %p114 = scmp.eq.s32.totalorder %s20, 1
    %p115 = scmp.ne.s32.totalorder %s110, %s112
    %p116 = scmp.eq.s32.totalorder %s20, 0
    %p117 = por %p115, %p116
    %p118 = scmp.ne.s32.totalorder %s110, %s112
    %p119 = scmp.eq.s32.totalorder %s25, 1
    %p120 = por %p118, %p119
    %p121 = scmp.ne.s32.totalorder %s112, %s113
    %p122 = scmp.eq.s32.totalorder %s25, 0
    %p123 = por %p121, %p122
    %p124 = scmp.ne.s32.totalorder %s112, %s113
    %p125 = scmp.eq.s32.totalorder %s26, 1
    %p126 = por %p124, %p125
    %p128 = scmp.ne.s32.totalorder %s113, %s127
    %p129 = scmp.eq.s32.totalorder %s26, 0
    %p130 = por %p128, %p129
    %s132 = sadd.s32 %s131, 1
    %p135 = scmp.eq.s32.totalorder %s20, 1
    %p136 = scmp.ne.s32.totalorder %s131, %s133
    %p137 = scmp.eq.s32.totalorder %s20, 0
    %p138 = por %p136, %p137
    %p139 = scmp.ne.s32.totalorder %s131, %s133
    %p140 = scmp.eq.s32.totalorder %s25, 1
    %p141 = por %p139, %p140
    %p142 = scmp.ne.s32.totalorder %s133, %s134
    %p143 = scmp.eq.s32.totalorder %s25, 0
    %p144 = por %p142, %p143
    %p145 = scmp.ne.s32.totalorder %s133, %s134
    %p146 = scmp.eq.s32.totalorder %s26, 1
    %p147 = por %p145, %p146
    %p149 = scmp.ne.s32.totalorder %s134, %s148
    %p150 = scmp.eq.s32.totalorder %s26, 0
    %p151 = por %p149, %p150
    %s153 = sadd.s32 %s152, 1
    %p156 = scmp.eq.s32.totalorder %s20, 1
    %p157 = scmp.ne.s32.totalorder %s152, %s154
    %p158 = scmp.eq.s32.totalorder %s20, 0
    %p159 = por %p157, %p158
    %p160 = scmp.ne.s32.totalorder %s152, %s154
    %p161 = scmp.eq.s32.totalorder %s25, 1
    %p162 = por %p160, %p161
    %p163 = scmp.ne.s32.totalorder %s154, %s155
    %p164 = scmp.eq.s32.totalorder %s25, 0
    %p165 = por %p163, %p164
    %p166 = scmp.ne.s32.totalorder %s154, %s155
    %p167 = scmp.eq.s32.totalorder %s26, 1
    %p168 = por %p166, %p167
    %p170 = scmp.ne.s32.totalorder %s155, %s169
    %p171 = scmp.eq.s32.totalorder %s26, 0
    %p172 = por %p170, %p171
    %s174 = sadd.s32 %s173, 1
    %p177 = scmp.eq.s32.totalorder %s20, 1
    %p178 = scmp.ne.s32.totalorder %s173, %s175
    %p179 = scmp.eq.s32.totalorder %s20, 0
    %p180 = por %p178, %p179
    %p181 = scmp.ne.s32.totalorder %s173, %s175
    %p182 = scmp.eq.s32.totalorder %s25, 1
    %p183 = por %p181, %p182
    %p184 = scmp.ne.s32.totalorder %s175, %s176
    %p185 = scmp.eq.s32.totalorder %s25, 0
    %p186 = por %p184, %p185
    %p187 = scmp.ne.s32.totalorder %s175, %s176
    %p188 = scmp.eq.s32.totalorder %s26, 1
    %p189 = por %p187, %p188
    %p191 = scmp.ne.s32.totalorder %s176, %s190
    %p192 = scmp.eq.s32.totalorder %s26, 0
    %p193 = por %p191, %p192
    %s194 = ssub.s32 %s27, %s39
    %s195 = ssub.s32 %s28, %s35
    %s196 = sor.u32 %s194, %s195
    %p197 = scmp.eq.s32.totalorder %s196, 0
    %s199 = sadd.s32 %s198, 1
    %s200 = scalar_select %p197, %s198, %s199
    %p203 = pneg %p197
    %p204 = scmp.eq.s32.totalorder %s20, 1
    %p205 = por %p203, %p204
    %p206 = scmp.ne.s32.totalorder %s198, %s201
    %p207 = scmp.eq.s32.totalorder %s20, 0
    %p208 = por %p206, %p207
    %p209 = scmp.ne.s32.totalorder %s198, %s201
    %p210 = scmp.eq.s32.totalorder %s25, 1
    %p211 = por %p209, %p210
    %p212 = scmp.ne.s32.totalorder %s201, %s202
    %p213 = scmp.eq.s32.totalorder %s25, 0
    %p214 = por %p212, %p213
    %p215 = scmp.ne.s32.totalorder %s201, %s202
    %p216 = scmp.eq.s32.totalorder %s26, 1
    %p217 = por %p215, %p216
    %p219 = scmp.ne.s32.totalorder %s202, %s218
    %p220 = scmp.eq.s32.totalorder %s26, 0
    %p221 = por %p219, %p220
    %p222 = scmp.le.s32.totalorder 1, %s20
    %p223 = scmp.lt.s32.totalorder %s20, 3
    %p224 = pnand %p222, %p223
    %p225 = pneg %p224
    // Predicated region
    $region9: #{tpu_custom_call.1} parent=5 // pred_check
      _
    $region10: #{tpu_custom_call.1} parent=5 // pred_check_branch
      %227 = sbr.rel (%p224) target = $region12
    $region11: #{tpu_custom_call.1} parent=5 // pred_region
      %s228 = ssub.s32 %s20, 1
      // Predicated region
      $region13: #{tpu_custom_call.1} parent=11 // pred_check
        %p229 = pneg %p81
      $region14: #{tpu_custom_call.1} parent=11 // pred_check_branch
        %231 = sbr.rel (%p229) target = $region16
      $region15: #{tpu_custom_call.1} parent=11 // pred_region
        _
      $region16: #{tpu_custom_call.1} parent=11 // pred_fallthru
        _
      // Predicated region
      $region17: #{tpu_custom_call.1} parent=11 // pred_check
        %p232 = pneg %p102
      $region18: #{tpu_custom_call.1} parent=11 // pred_check_branch
        %234 = sbr.rel (%p232) target = $region20
      $region19: #{tpu_custom_call.1} parent=11 // pred_region
        _
      $region20: #{tpu_custom_call.1} parent=11 // pred_fallthru
        _
      // Predicated region
      $region21: #{tpu_custom_call.1} parent=11 // pred_check
        %p235 = pneg %p123
      $region22: #{tpu_custom_call.1} parent=11 // pred_check_branch
        %237 = sbr.rel (%p235) target = $region24
      $region23: #{tpu_custom_call.1} parent=11 // pred_region
        _
      $region24: #{tpu_custom_call.1} parent=11 // pred_fallthru
        _
      // Predicated region
      $region25: #{tpu_custom_call.1} parent=11 // pred_check
        %p238 = pneg %p144
      $region26: #{tpu_custom_call.1} parent=11 // pred_check_branch
        %240 = sbr.rel (%p238) target = $region28
      $region27: #{tpu_custom_call.1} parent=11 // pred_region
        _
      $region28: #{tpu_custom_call.1} parent=11 // pred_fallthru
        _
      // Predicated region
      $region29: #{tpu_custom_call.1} parent=11 // pred_check
        %p241 = pneg %p165
      $region30: #{tpu_custom_call.1} parent=11 // pred_check_branch
        %243 = sbr.rel (%p241) target = $region32
      $region31: #{tpu_custom_call.1} parent=11 // pred_region
        _
      $region32: #{tpu_custom_call.1} parent=11 // pred_fallthru
        _
      // Predicated region
      $region33: #{tpu_custom_call.1} parent=11 // pred_check
        %p244 = pneg %p186
      $region34: #{tpu_custom_call.1} parent=11 // pred_check_branch
        %246 = sbr.rel (%p244) target = $region36
      $region35: #{tpu_custom_call.1} parent=11 // pred_region
        _
      $region36: #{tpu_custom_call.1} parent=11 // pred_fallthru
        _
    $region12: #{tpu_custom_call.1} parent=5 // pred_fallthru
      _
    %p247 = scmp.lt.s32.totalorder %s20, 2
    // Predicated region
    $region37: #{tpu_custom_call.1} parent=5 // pred_check
      %p248 = pneg %p247
    $region38: #{tpu_custom_call.1} parent=5 // pred_check_branch
      %250 = sbr.rel (%p248) target = $region40
    $region39: #{tpu_custom_call.1} parent=5 // pred_region
      // Predicated region
      $region41: #{tpu_custom_call.1} parent=39 // pred_check
        %p251 = pneg %p54
      $region42: #{tpu_custom_call.1} parent=39 // pred_check_branch
        %253 = sbr.rel (%p251) target = $region44
      $region43: #{tpu_custom_call.1} parent=39 // pred_region
        %s254 = smul.u32 2, %s28
        %p255 = scmp.lt.s32.totalorder %s27, 1
        %s256 = scalar_select %p255, %s27, 1
        %p257 = scmp.lt.s32.totalorder %s254, 1
        %s258 = scalar_select %p257, %s254, 1
        %s259 = smul.addr %s256, 2
        %s260 = sadd.s32 %s258, %s259
        %s261 = smul.addr %s260, 4
        %s262 = scalar_lea.vmem %s1, %s261
        %s263 = smul.u32 2, %s28
      $region44: #{tpu_custom_call.1} parent=39 // pred_fallthru
        _
    $region40: #{tpu_custom_call.1} parent=5 // pred_fallthru
      _
    %p264 = scmp.le.s32.totalorder 1, %s20
    %p265 = scmp.lt.s32.totalorder %s20, 3
    %p266 = pnand %p264, %p265
    %p267 = pneg %p266
    // Predicated region
    $region45: #{tpu_custom_call.1} parent=5 // pred_check
      _
    $region46: #{tpu_custom_call.1} parent=5 // pred_check_branch
      %269 = sbr.rel (%p266) target = $region48
    $region47: #{tpu_custom_call.1} parent=5 // pred_region
      %s270 = ssub.s32 %s20, 1
      %s271 = smul.u32 2, %s30
      %p272 = scmp.lt.s32.totalorder %s29, 1
      %s273 = scalar_select %p272, %s29, 1
      %p274 = scmp.lt.s32.totalorder %s271, 1
      %s275 = scalar_select %p274, %s271, 1
      %s276 = smul.addr %s273, 2
      %s277 = sadd.s32 %s275, %s276
      %s278 = smul.addr %s277, 4
      %s279 = scalar_lea.vmem %s1, %s278
      %p280 = pneg %p60
      %p281 = pneg %p57
      %p282 = pneg %p81
      %p283 = pneg %p78
      %p284 = pneg %p102
      %p285 = pneg %p99
      %p286 = pneg %p123
      %p287 = pneg %p120
      %p288 = pneg %p144
      %p289 = pneg %p141
      %p290 = pneg %p165
      %p291 = pneg %p162
      %p292 = pneg %p186
      %p293 = pneg %p183
      %p294 = pneg %p214
      %p295 = pneg %p211
      %s296 = smul.u32 2, %s30
      %p297 = scmp.lt.s32.totalorder %s29, 1
      %s298 = scalar_select %p297, %s29, 1
      %p299 = scmp.lt.s32.totalorder %s296, 1
      %s300 = scalar_select %p299, %s296, 1
      %s301 = smul.addr %s298, 2
      %s302 = sadd.s32 %s300, %s301
      %s303 = smul.addr %s302, 4
      %s304 = scalar_lea.vmem %s8, %s303
      %s305 = smul.u32 2, %s30
      %p306 = scmp.lt.s32.totalorder %s29, 1
      %s307 = scalar_select %p306, %s29, 1
      %p308 = scmp.lt.s32.totalorder %s305, 1
      %s309 = scalar_select %p308, %s305, 1
      %s310 = smul.addr %s307, 2
      %s311 = sadd.s32 %s309, %s310
      %s312 = smul.addr %s311, 4
      %s313 = scalar_lea.vmem %s1, %s312
      %s314 = smul.u32 2, %s30
      %s315 = smul.u32 2, %s30
      %p316 = scmp.lt.s32.totalorder %s29, 1
      %s317 = scalar_select %p316, %s29, 1
      %p318 = scmp.lt.s32.totalorder %s315, 1
      %s319 = scalar_select %p318, %s315, 1
      %s320 = smul.addr %s317, 2
      %s321 = sadd.s32 %s319, %s320
      %s322 = smul.addr %s321, 4
      %s323 = scalar_lea.vmem %s8, %s322
      %s324 = smul.u32 2, %s30
      %v325 = vld [vmem:[%s313] sm:$0xff]
      %v326 = vld [vmem:[%s2] sm:$0xff]
      %v327 = vld [vmem:[%s2 + $0x8] sm:$0xff]
      %v328 = vld [vmem:[%s2 + $0x10] sm:$0xff]
      %v329 = vld [vmem:[%s2 + $0x18] sm:$0xff]
      %v330 = vld [vmem:[%s3] sm:$0xff]
      %v331 = vld [vmem:[%s3 + $0x8] sm:$0xff]
      %v332 = vld [vmem:[%s3 + $0x10] sm:$0xff]
      %v333 = vld [vmem:[%s3 + $0x18] sm:$0xff]
      %335 = vset.pattern.permute.xlu0 0
      %336 = vperm.xlu0 %335, %v330
      %v337 = vpop.permute.xlu0 %336
      %340 = vset.pattern.permute.xlu0 0
      %341 = vperm.xlu0 %340, %v331
      %v342 = vpop.permute.xlu0 %341
      %345 = vset.pattern.permute.xlu0 0
      %346 = vperm.xlu0 %345, %v332
      %v347 = vpop.permute.xlu0 %346
      %350 = vset.pattern.permute.xlu0 0
      %351 = vperm.xlu0 %350, %v333
      %v352 = vpop.permute.xlu0 %351
      %v355 = vcombine.high %v325, %v325
      %vm356 = vcmask 31744
      %v358 = vsel %vm356, %v326, 0
      %v361 = vsel %vm356, %v327, 0
      %v364 = vsel %vm356, %v328, 0
      %v367 = vsel %vm356, %v329, 0
      %vm369 = vcmask 1043456
      %v370 = vsel %vm369, %v325, 0
      %v372 = vsel %vm369, %v355, 0
      %374 = vmatprep.subr.mxu0 %v372
      %375 = vmatpush1.msra.mxu0 %v370
      %376 = vmatprep.subr.mxu0 0.0
      %377 = vmatpush1.msra.mxu0 0.0
      %378 = vmatprep.subr.mxu0 0.0
      %379 = vmatpush1.msra.mxu0 0.0
      %380 = vmatprep.subr.mxu0 0.0
      %381 = vmatpush1.msra.mxu0 0.0
      %382 = vmatprep.subr.mxu0 0.0
      %383 = vmatpush1.msra.mxu0 0.0
      %384 = vmatprep.subr.mxu0 0.0
      %385 = vmatpush1.msra.mxu0 0.0
      %386 = vmatprep.subr.mxu0 0.0
      %387 = vmatpush1.msra.mxu0 0.0
      %388 = vmatprep.subr.mxu0 0.0
      %389 = vmatpush1.msra.mxu0 0.0
      %390 = vmatprep.subr.mxu0 0.0
      %391 = vmatpush1.msra.mxu0 0.0
      %392 = vmatprep.subr.mxu0 0.0
      %393 = vmatpush1.msra.mxu0 0.0
      %394 = vmatprep.subr.mxu0 0.0
      %395 = vmatpush1.msra.mxu0 0.0
      %396 = vmatprep.subr.mxu0 0.0
      %397 = vmatpush1.msra.mxu0 0.0
      %398 = vmatprep.subr.mxu0 0.0
      %399 = vmatpush1.msra.mxu0 0.0
      %400 = vmatprep.subr.mxu0 0.0
      %401 = vmatpush1.msra.mxu0 0.0
      %402 = vmatprep.subr.mxu0 0.0
      %403 = vmatpush1.msra.mxu0 0.0
      %404 = vmatprep.subr.mxu0 0.0
      %405 = vmatpush1.msra.mxu0 0.0
      %406 = vmatprep.subr.mxu0 0.0
      %407 = vmatpush1.msra.mxu0 0.0
      %408 = vmatprep.subr.mxu0 0.0
      %409 = vmatpush1.msra.mxu0 0.0
      %410 = vmatprep.subr.mxu0 0.0
      %411 = vmatpush1.msra.mxu0 0.0
      %412 = vmatprep.subr.mxu0 0.0
      %413 = vmatpush1.msra.mxu0 0.0
      %414 = vmatprep.subr.mxu0 0.0
      %415 = vmatpush1.msra.mxu0 0.0
      %416 = vmatprep.subr.mxu0 0.0
      %417 = vmatpush1.msra.mxu0 0.0
      %418 = vmatprep.subr.mxu0 0.0
      %419 = vmatpush1.msra.mxu0 0.0
      %420 = vmatprep.subr.mxu0 0.0
      %421 = vmatpush1.msra.mxu0 0.0
      %422 = vmatprep.subr.mxu0 0.0
      %423 = vmatpush1.msra.mxu0 0.0
      %424 = vmatprep.subr.mxu0 0.0
      %425 = vmatpush1.msra.mxu0 0.0
      %426 = vmatprep.subr.mxu0 0.0
      %427 = vmatpush1.msra.mxu0 0.0
      %428 = vmatprep.subr.mxu0 0.0
      %429 = vmatpush1.msra.mxu0 0.0
      %430 = vmatprep.subr.mxu0 0.0
      %431 = vmatpush1.msra.mxu0 0.0
      %432 = vmatprep.subr.mxu0 0.0
      %433 = vmatpush1.msra.mxu0 0.0
      %434 = vmatprep.subr.mxu0 0.0
      %435 = vmatpush1.msra.mxu0 0.0
      %436 = vmatprep.subr.mxu0 0.0
      %437 = vmatpush1.msra.mxu0 0.0
      %438 = vmatprep.mubr.f32.mxu0 0.0
      %439 = vmatmul.mubr.f32.gmra.mrb[0].mxu0 %v358
      %v440 = vpop.f32.mrb[0].mxu0
      %v441 = vadd.f32 %v337, %v440
      %v442 = vpop.f32.mrb[0].mxu0
      %v443 = vadd.f32 %v337, %v442
      %444 = vmatprep.mubr.f32.mxu0 0.0
      %445 = vmatmul.mubr.f32.gmra.mrb[0].mxu0 %v361
      %v446 = vpop.f32.mrb[0].mxu0
      %v447 = vadd.f32 %v342, %v446
      %v448 = vpop.f32.mrb[0].mxu0
      %v449 = vadd.f32 %v342, %v448
      %450 = vmatprep.mubr.f32.mxu0 0.0
      %451 = vmatmul.mubr.f32.gmra.mrb[0].mxu0 %v364
      %v452 = vpop.f32.mrb[0].mxu0
      %v453 = vadd.f32 %v347, %v452
      %v454 = vpop.f32.mrb[0].mxu0
      %v455 = vadd.f32 %v347, %v454
      %456 = vmatprep.mubr.f32.mxu0 0.0
      %457 = vmatmul.mubr.f32.gmra.mrb[0].mxu0 %v367
      %v458 = vpop.f32.mrb[0].mxu0
      %v459 = vadd.f32 %v352, %v458
      %v460 = vpop.f32.mrb[0].mxu0
      %v461 = vadd.f32 %v352, %v460
      %462 = vdwg.mxu0
      %s463 = sld [smem:[#allocation3]]
      %vm464 = vcmp.gt.f32.partialorder %v441, 0.0
      %vm465 = vcmp.gt.f32.partialorder %v443, 0.0
      %vm466 = vcmp.gt.f32.partialorder %v447, 0.0
      %vm467 = vcmp.gt.f32.partialorder %v449, 0.0
      %vm468 = vcmp.gt.f32.partialorder %v453, 0.0
      %vm469 = vcmp.gt.f32.partialorder %v455, 0.0
      %vm470 = vcmp.gt.f32.partialorder %v459, 0.0
      %vm471 = vcmp.gt.f32.partialorder %v461, 0.0
      %v472 = vstv %s463
      %v473 = vmul.f32 %v472, %v441
      %v474 = vmul.f32 %v472, %v443
      %v475 = vmul.f32 %v472, %v447
      %v476 = vmul.f32 %v472, %v449
      %v477 = vmul.f32 %v472, %v453
      %v478 = vmul.f32 %v472, %v455
      %v479 = vmul.f32 %v472, %v459
      %v480 = vmul.f32 %v472, %v461
      %v481 = vsel %vm464, %v441, %v473
      %v482 = vsel %vm465, %v443, %v474
      %v483 = vsel %vm466, %v447, %v475
      %v484 = vsel %vm467, %v449, %v476
      %v485 = vsel %vm468, %v453, %v477
      %v486 = vsel %vm469, %v455, %v478
      %v487 = vsel %vm470, %v459, %v479
      %v488 = vsel %vm471, %v461, %v480
      %v489 = vld [vmem:[%s4] sm:$0xff]
      %v490 = vld [vmem:[%s4 + $0x8] sm:$0xff]
      %v491 = vld [vmem:[%s4 + $0x10] sm:$0xff]
      %v492 = vld [vmem:[%s4 + $0x18] sm:$0xff]
      %v493 = vld [vmem:[%s5] sm:$0xff]
      %v494 = vld [vmem:[%s5 + $0x8] sm:$0xff]
      %v495 = vld [vmem:[%s5 + $0x10] sm:$0xff]
      %v496 = vld [vmem:[%s5 + $0x18] sm:$0xff]
      %498 = vset.pattern.permute.xlu0 0
      %499 = vperm.xlu0 %498, %v493
      %v500 = vpop.permute.xlu0 %499
      %503 = vset.pattern.permute.xlu0 0
      %504 = vperm.xlu0 %503, %v494
      %v505 = vpop.permute.xlu0 %504
      %508 = vset.pattern.permute.xlu0 0
      %509 = vperm.xlu0 %508, %v495
      %v510 = vpop.permute.xlu0 %509
      %513 = vset.pattern.permute.xlu0 0
      %514 = vperm.xlu0 %513, %v496
      %v515 = vpop.permute.xlu0 %514
      %vm517 = vcmask 261120
      %v519 = vsel %vm517, %v489, 0
      %v522 = vsel %vm517, %v490, 0
      %v525 = vsel %vm517, %v491, 0
      %v528 = vsel %vm517, %v492, 0
      %530 = vmatprep.subr.mxu0 %v482
      %531 = vmatpush1.msra.mxu0 %v481
      %532 = vmatprep.subr.mxu0 %v484
      %533 = vmatpush1.msra.mxu0 %v483
      %534 = vmatprep.subr.mxu0 %v486
      %535 = vmatpush1.msra.mxu0 %v485
      %536 = vmatprep.subr.mxu0 %v488
      %537 = vmatpush1.msra.mxu0 %v487
      %538 = vmatprep.subr.mxu0 0.0
      %539 = vmatpush1.msra.mxu0 0.0
      %540 = vmatprep.subr.mxu0 0.0
      %541 = vmatpush1.msra.mxu0 0.0
      %542 = vmatprep.subr.mxu0 0.0
      %543 = vmatpush1.msra.mxu0 0.0
      %544 = vmatprep.subr.mxu0 0.0
      %545 = vmatpush1.msra.mxu0 0.0
      %546 = vmatprep.subr.mxu0 0.0
      %547 = vmatpush1.msra.mxu0 0.0
      %548 = vmatprep.subr.mxu0 0.0
      %549 = vmatpush1.msra.mxu0 0.0
      %550 = vmatprep.subr.mxu0 0.0
      %551 = vmatpush1.msra.mxu0 0.0
      %552 = vmatprep.subr.mxu0 0.0
      %553 = vmatpush1.msra.mxu0 0.0
      %554 = vmatprep.subr.mxu0 0.0
      %555 = vmatpush1.msra.mxu0 0.0
      %556 = vmatprep.subr.mxu0 0.0
      %557 = vmatpush1.msra.mxu0 0.0
      %558 = vmatprep.subr.mxu0 0.0
      %559 = vmatpush1.msra.mxu0 0.0
      %560 = vmatprep.subr.mxu0 0.0
      %561 = vmatpush1.msra.mxu0 0.0
      %562 = vmatprep.subr.mxu0 0.0
      %563 = vmatpush1.msra.mxu0 0.0
      %564 = vmatprep.subr.mxu0 0.0
      %565 = vmatpush1.msra.mxu0 0.0
      %566 = vmatprep.subr.mxu0 0.0
      %567 = vmatpush1.msra.mxu0 0.0
      %568 = vmatprep.subr.mxu0 0.0
      %569 = vmatpush1.msra.mxu0 0.0
      %570 = vmatprep.subr.mxu0 0.0
      %571 = vmatpush1.msra.mxu0 0.0
      %572 = vmatprep.subr.mxu0 0.0
      %573 = vmatpush1.msra.mxu0 0.0
      %574 = vmatprep.subr.mxu0 0.0
      %575 = vmatpush1.msra.mxu0 0.0
      %576 = vmatprep.subr.mxu0 0.0
      %577 = vmatpush1.msra.mxu0 0.0
      %578 = vmatprep.subr.mxu0 0.0
      %579 = vmatpush1.msra.mxu0 0.0
      %580 = vmatprep.subr.mxu0 0.0
      %581 = vmatpush1.msra.mxu0 0.0
      %582 = vmatprep.subr.mxu0 0.0
      %583 = vmatpush1.msra.mxu0 0.0
      %584 = vmatprep.subr.mxu0 0.0
      %585 = vmatpush1.msra.mxu0 0.0
      %586 = vmatprep.subr.mxu0 0.0
      %587 = vmatpush1.msra.mxu0 0.0
      %588 = vmatprep.subr.mxu0 0.0
      %589 = vmatpush1.msra.mxu0 0.0
      %590 = vmatprep.subr.mxu0 0.0
      %591 = vmatpush1.msra.mxu0 0.0
      %592 = vmatprep.subr.mxu0 0.0
      %593 = vmatpush1.msra.mxu0 0.0
      %594 = vmatprep.mubr.f32.mxu0 0.0
      %595 = vmatmul.mubr.f32.gmra.mrb[0].mxu0 %v519
      %v596 = vpop.f32.mrb[0].mxu0
      %v597 = vadd.f32 %v500, %v596
      %v598 = vpop.f32.mrb[0].mxu0
      %v599 = vadd.f32 %v500, %v598
      %600 = vmatprep.mubr.f32.mxu0 0.0
      %601 = vmatmul.mubr.f32.gmra.mrb[0].mxu0 %v522
      %v602 = vpop.f32.mrb[0].mxu0
      %v603 = vadd.f32 %v505, %v602
      %v604 = vpop.f32.mrb[0].mxu0
      %v605 = vadd.f32 %v505, %v604
      %606 = vmatprep.mubr.f32.mxu0 0.0
      %607 = vmatmul.mubr.f32.gmra.mrb[0].mxu0 %v525
      %v608 = vpop.f32.mrb[0].mxu0
      %v609 = vadd.f32 %v510, %v608
      %v610 = vpop.f32.mrb[0].mxu0
      %v611 = vadd.f32 %v510, %v610
      %612 = vmatprep.mubr.f32.mxu0 0.0
      %613 = vmatmul.mubr.f32.gmra.mrb[0].mxu0 %v528
      %v614 = vpop.f32.mrb[0].mxu0
      %v615 = vadd.f32 %v515, %v614
      %v616 = vpop.f32.mrb[0].mxu0
      %v617 = vadd.f32 %v515, %v616
      %618 = vdwg.mxu0
      %s619 = sld [smem:[#allocation3 + $0x1]]
      %vm620 = vcmp.gt.f32.partialorder %v597, 0.0
      %vm621 = vcmp.gt.f32.partialorder %v599, 0.0
      %vm622 = vcmp.gt.f32.partialorder %v603, 0.0
      %vm623 = vcmp.gt.f32.partialorder %v605, 0.0
      %vm624 = vcmp.gt.f32.partialorder %v609, 0.0
      %vm625 = vcmp.gt.f32.partialorder %v611, 0.0
      %vm626 = vcmp.gt.f32.partialorder %v615, 0.0
      %vm627 = vcmp.gt.f32.partialorder %v617, 0.0
      %v628 = vstv %s619
      %v629 = vmul.f32 %v628, %v597
      %v630 = vmul.f32 %v628, %v599
      %v631 = vmul.f32 %v628, %v603
      %v632 = vmul.f32 %v628, %v605
      %v633 = vmul.f32 %v628, %v609
      %v634 = vmul.f32 %v628, %v611
      %v635 = vmul.f32 %v628, %v615
      %v636 = vmul.f32 %v628, %v617
      %v637 = vsel %vm620, %v597, %v629
      %v638 = vsel %vm621, %v599, %v630
      %v639 = vsel %vm622, %v603, %v631
      %v640 = vsel %vm623, %v605, %v632
      %v641 = vsel %vm624, %v609, %v633
      %v642 = vsel %vm625, %v611, %v634
      %v643 = vsel %vm626, %v615, %v635
      %v644 = vsel %vm627, %v617, %v636
      %v645 = vld [vmem:[%s6] sm:$0x7]
      %v646 = vld [vmem:[%s7] sm:$0x7]
      %648 = vset.pattern.permute.xlu0 0
      %649 = vperm.xlu0 %648, %v646
      %v650 = vpop.permute.xlu0 %649
      %v653 = vsel %vm517, %v645, 0
      %655 = vmatprep.subr.mxu0 %v638
      %656 = vmatpush1.msra.mxu0 %v637
      %657 = vmatprep.subr.mxu0 %v640
      %658 = vmatpush1.msra.mxu0 %v639
      %659 = vmatprep.subr.mxu0 %v642
      %660 = vmatpush1.msra.mxu0 %v641
      %661 = vmatprep.subr.mxu0 %v644
      %662 = vmatpush1.msra.mxu0 %v643
      %663 = vmatprep.subr.mxu0 0.0
      %664 = vmatpush1.msra.mxu0 0.0
      %665 = vmatprep.subr.mxu0 0.0
      %666 = vmatpush1.msra.mxu0 0.0
      %667 = vmatprep.subr.mxu0 0.0
      %668 = vmatpush1.msra.mxu0 0.0
      %669 = vmatprep.subr.mxu0 0.0
      %670 = vmatpush1.msra.mxu0 0.0
      %671 = vmatprep.subr.mxu0 0.0
      %672 = vmatpush1.msra.mxu0 0.0
      %673 = vmatprep.subr.mxu0 0.0
      %674 = vmatpush1.msra.mxu0 0.0
      %675 = vmatprep.subr.mxu0 0.0
      %676 = vmatpush1.msra.mxu0 0.0
      %677 = vmatprep.subr.mxu0 0.0
      %678 = vmatpush1.msra.mxu0 0.0
      %679 = vmatprep.subr.mxu0 0.0
      %680 = vmatpush1.msra.mxu0 0.0
      %681 = vmatprep.subr.mxu0 0.0
      %682 = vmatpush1.msra.mxu0 0.0
      %683 = vmatprep.subr.mxu0 0.0
      %684 = vmatpush1.msra.mxu0 0.0
      %685 = vmatprep.subr.mxu0 0.0
      %686 = vmatpush1.msra.mxu0 0.0
      %687 = vmatprep.subr.mxu0 0.0
      %688 = vmatpush1.msra.mxu0 0.0
      %689 = vmatprep.subr.mxu0 0.0
      %690 = vmatpush1.msra.mxu0 0.0
      %691 = vmatprep.subr.mxu0 0.0
      %692 = vmatpush1.msra.mxu0 0.0
      %693 = vmatprep.subr.mxu0 0.0
      %694 = vmatpush1.msra.mxu0 0.0
      %695 = vmatprep.subr.mxu0 0.0
      %696 = vmatpush1.msra.mxu0 0.0
      %697 = vmatprep.subr.mxu0 0.0
      %698 = vmatpush1.msra.mxu0 0.0
      %699 = vmatprep.subr.mxu0 0.0
      %700 = vmatpush1.msra.mxu0 0.0
      %701 = vmatprep.subr.mxu0 0.0
      %702 = vmatpush1.msra.mxu0 0.0
      %703 = vmatprep.subr.mxu0 0.0
      %704 = vmatpush1.msra.mxu0 0.0
      %705 = vmatprep.subr.mxu0 0.0
      %706 = vmatpush1.msra.mxu0 0.0
      %707 = vmatprep.subr.mxu0 0.0
      %708 = vmatpush1.msra.mxu0 0.0
      %709 = vmatprep.subr.mxu0 0.0
      %710 = vmatpush1.msra.mxu0 0.0
      %711 = vmatprep.subr.mxu0 0.0
      %712 = vmatpush1.msra.mxu0 0.0
      %713 = vmatprep.subr.mxu0 0.0
      %714 = vmatpush1.msra.mxu0 0.0
      %715 = vmatprep.subr.mxu0 0.0
      %716 = vmatpush1.msra.mxu0 0.0
      %717 = vmatprep.subr.mxu0 0.0
      %718 = vmatpush1.msra.mxu0 0.0
      %719 = vmatprep.mubr.f32.mxu0 0.0
      %720 = vmatmul.mubr.f32.gmra.mrb[0].mxu0 %v653
      %v721 = vpop.f32.mrb[0].mxu0
      %v722 = vadd.f32 %v650, %v721
      %v723 = vpop.f32.mrb[0].mxu0
      %v724 = vadd.f32 %v650, %v723
      %725 = vdwg.mxu0
      %v728 = vcombine.low %v722, %v724
      %730 = vst [vmem:[%s323] sm:$0x77] %v728
      %s731 = smul.u32 2, %s30
      %p732 = scmp.lt.s32.totalorder %s29, 1
      %s733 = scalar_select %p732, %s29, 1
      %p734 = scmp.lt.s32.totalorder %s731, 1
      %s735 = scalar_select %p734, %s731, 1
      %s736 = smul.addr %s733, 2
      %s737 = sadd.s32 %s735, %s736
      %s738 = smul.addr %s737, 4
      %s739 = scalar_lea.vmem %s8, %s738
      // Predicated region
      $region49: #{tpu_custom_call.1} parent=47 // pred_check
        %p740 = pneg %p211
      $region50: #{tpu_custom_call.1} parent=47 // pred_check_branch
        %742 = sbr.rel (%p740) target = $region52
      $region51: #{tpu_custom_call.1} parent=47 // pred_region
        %s743 = smul.u32 2, %s30
      $region52: #{tpu_custom_call.1} parent=47 // pred_fallthru
        _
    $region48: #{tpu_custom_call.1} parent=5 // pred_fallthru
      _
    %p744 = scmp.le.s32.totalorder 2, %s20
    // Predicated region
    $region53: #{tpu_custom_call.1} parent=5 // pred_check
      %p745 = pneg %p744
    $region54: #{tpu_custom_call.1} parent=5 // pred_check_branch
      %747 = sbr.rel (%p745) target = $region56
    $region55: #{tpu_custom_call.1} parent=5 // pred_region
      %s748 = ssub.s32 %s20, 2
      // Predicated region
      $region57: #{tpu_custom_call.1} parent=55 // pred_check
        %p749 = pneg %p217
      $region58: #{tpu_custom_call.1} parent=55 // pred_check_branch
        %751 = sbr.rel (%p749) target = $region60
      $region59: #{tpu_custom_call.1} parent=55 // pred_region
        %s752 = smul.u32 2, %s32
        %p753 = scmp.lt.s32.totalorder %s31, 1
        %s754 = scalar_select %p753, %s31, 1
        %p755 = scmp.lt.s32.totalorder %s752, 1
        %s756 = scalar_select %p755, %s752, 1
        %s757 = smul.addr %s754, 2
        %s758 = sadd.s32 %s756, %s757
        %s759 = smul.addr %s758, 4
        %s760 = scalar_lea.vmem %s8, %s759
      $region60: #{tpu_custom_call.1} parent=55 // pred_fallthru
        _
    $region56: #{tpu_custom_call.1} parent=5 // pred_fallthru
      _
  $region6: #{tpu_custom_call.1} parent=0 // loop_footer
    %s24 = sadd.s32 1, %s20
  $region7: #{tpu_custom_call.1} parent=0 // loop_footer_branch
    %19 = sbr.rel target = $region3
  $region8: #{tpu_custom_call.1} parent=0 // loop_exit
    _

// kernel: tpu_custom_call.1
$region0: #{tpu_custom_call.1}
  #allocation0 [shape = 'u32[]', space=smem, size = 0x4, offset = 0x4, fixed_abs, tag = 'smem constant byte address 0x4 - core index']
  #allocation1 [shape = 'u32[144,128]{1,0:T(1,128)}', space=vmem, size = 0x12000, scoped, tag = 'internal scratch']
  #allocation2 [shape = 's32[1]{0}', space=sflag, size = 0x4, scoped, tag = 'scoped memory for tpu_custom_call.1']
  #allocation3 [shape = 'u8[512]{0}', space=smem, size = 0x200, scoped, tag = 'prefetched SMEM operand 0']
  %s0 = inlined_call_operand.vmem [shape: f32[2], index: 0, kind: input, shape index: {}]
  %s1 = inlined_call_operand.vmem [shape: f32[2,4,256], index: 1, kind: input, shape index: {}]
  %s2 = inlined_call_operand.vmem [shape: f32[32,4], index: 2, kind: input, shape index: {}]
  %s3 = inlined_call_operand.vmem [shape: f32[32,1], index: 3, kind: input, shape index: {}]
  %s4 = inlined_call_operand.vmem [shape: f32[32,32], index: 4, kind: input, shape index: {}]
  %s5 = inlined_call_operand.vmem [shape: f32[32,1], index: 5, kind: input, shape index: {}]
  %s6 = inlined_call_operand.vmem [shape: f32[3,32], index: 6, kind: input, shape index: {}]
  %s7 = inlined_call_operand.vmem [shape: f32[3,1], index: 7, kind: input, shape index: {}]
  %s8 = inlined_call_operand.vmem [shape: f32[2,3,256], index: 8, kind: output, shape index: {}]
  %s9 = sld [smem:[#allocation0]]
  $region61: #{tpu_custom_call.1} parent=0
    _
  %s11 = ssub.s32 1, %s9
  %s12 = scalar_select 0, %s11, %s9
  %s13 = sshll.u32 %s0, 4
  %s14 = int_to_ptr.vmem [resolvable:$true] %s13
  %16 = dma.vmem_to_smem %s14, 16, [#allocation3], [#allocation2]
  %17 = dma.done [#allocation2], 16
  %18 = sfence
  loop: start=0, step=1, limit=4
  $region2: #{tpu_custom_call.1} parent=0 // loop_pre_header
    _
  $region3: #{tpu_custom_call.1} parent=0 // loop_header
    %s20 = sphi 0, %s24
    %p21 = scmp.ge.s32.totalorder %s20, 4
    %s27 = sphi 0, %s39
    %s28 = sphi 0, %s35
    %s29 = sphi 0, %s27
    %s30 = sphi 0, %s28
    %s31 = sphi 0, %s29
    %s32 = sphi 0, %s30
    %s44 = sphi 0, %s46
    %s47 = sphi 0, %s44
    %s48 = sphi 0, %s47
    %s64 = sphi 0, %s48
    %s68 = sphi 0, %s68
    %s70 = sphi 0, %s68
    %s71 = sphi 0, %s70
    %s85 = sphi 0, %s71
    %s89 = sphi 0, %s89
    %s91 = sphi 0, %s89
    %s92 = sphi 0, %s91
    %s106 = sphi 0, %s92
    %s110 = sphi 0, %s110
    %s112 = sphi 0, %s110
    %s113 = sphi 0, %s112
    %s127 = sphi 0, %s113
    %s131 = sphi 0, %s131
    %s133 = sphi 0, %s131
    %s134 = sphi 0, %s133
    %s148 = sphi 0, %s134
    %s152 = sphi 0, %s152
    %s154 = sphi 0, %s152
    %s155 = sphi 0, %s154
    %s169 = sphi 0, %s155
    %s173 = sphi 0, %s173
    %s175 = sphi 0, %s173
    %s176 = sphi 0, %s175
    %s190 = sphi 0, %s176
    %s198 = sphi 0, %s200
    %s201 = sphi 0, %s198
    %s202 = sphi 0, %s201
    %s218 = sphi 0, %s202
  $region4: #{tpu_custom_call.1} parent=0 // loop_header_branch
    %23 = sbr.rel (%p21) target = $region8
  $region5: #{tpu_custom_call.1} parent=0 // loop_body
    %s25 = ssub.s32 %s20, 1
    %s26 = ssub.s32 %s20, 2
    %s33 = sadd.s32 1, %s28
    %p34 = scmp.ge.s32.totalorder %s33, 1
    %s35 = scalar_select %p34, 0, %s33
    %s36 = sadd.s32 1, %s27
    %s37 = scalar_select %p34, %s36, %s27
    %p38 = scmp.ge.s32.totalorder %s37, 2
    %s39 = scalar_select %p38, 0, %s37
    %s40 = ssub.s32 %s27, %s39
    %s41 = ssub.s32 %s28, %s35
    %s42 = sor.u32 %s40, %s41
    %p43 = scmp.eq.s32.totalorder %s42, 0
    %s45 = sadd.s32 %s44, 1
    %s46 = scalar_select %p43, %s44, %s45
    %p49 = pneg %p43
    %p50 = scmp.eq.s32.totalorder %s20, 1
    %p51 = por %p49, %p50
    %p52 = scmp.ne.s32.totalorder %s44, %s47
    %p53 = scmp.eq.s32.totalorder %s20, 0
    %p54 = por %p52, %p53
    %p55 = scmp.ne.s32.totalorder %s44, %s47
    %p56 = scmp.eq.s32.totalorder %s25, 1
    %p57 = por %p55, %p56
    %p58 = scmp.ne.s32.totalorder %s47, %s48
    %p59 = scmp.eq.s32.totalorder %s25, 0
    %p60 = por %p58, %p59
    %p61 = scmp.ne.s32.totalorder %s47, %s48
    %p62 = scmp.eq.s32.totalorder %s26, 1
    %p63 = por %p61, %p62
    %p65 = scmp.ne.s32.totalorder %s48, %s64
    %p66 = scmp.eq.s32.totalorder %s26, 0
    %p67 = por %p65, %p66
    %s69 = sadd.s32 %s68, 1
    %p72 = scmp.eq.s32.totalorder %s20, 1
    %p73 = scmp.ne.s32.totalorder %s68, %s70
    %p74 = scmp.eq.s32.totalorder %s20, 0
    %p75 = por %p73, %p74
    %p76 = scmp.ne.s32.totalorder %s68, %s70
    %p77 = scmp.eq.s32.totalorder %s25, 1
    %p78 = por %p76, %p77
    %p79 = scmp.ne.s32.totalorder %s70, %s71
    %p80 = scmp.eq.s32.totalorder %s25, 0
    %p81 = por %p79, %p80
    %p82 = scmp.ne.s32.totalorder %s70, %s71
    %p83 = scmp.eq.s32.totalorder %s26, 1
    %p84 = por %p82, %p83
    %p86 = scmp.ne.s32.totalorder %s71, %s85
    %p87 = scmp.eq.s32.totalorder %s26, 0
    %p88 = por %p86, %p87
    %s90 = sadd.s32 %s89, 1
    %p93 = scmp.eq.s32.totalorder %s20, 1
    %p94 = scmp.ne.s32.totalorder %s89, %s91
    %p95 = scmp.eq.s32.totalorder %s20, 0
    %p96 = por %p94, %p95
    %p97 = scmp.ne.s32.totalorder %s89, %s91
    %p98 = scmp.eq.s32.totalorder %s25, 1
    %p99 = por %p97, %p98
    %p100 = scmp.ne.s32.totalorder %s91, %s92
    %p101 = scmp.eq.s32.totalorder %s25, 0
    %p102 = por %p100, %p101
    %p103 = scmp.ne.s32.totalorder %s91, %s92
    %p104 = scmp.eq.s32.totalorder %s26, 1
    %p105 = por %p103, %p104
    %p107 = scmp.ne.s32.totalorder %s92, %s106
    %p108 = scmp.eq.s32.totalorder %s26, 0
    %p109 = por %p107, %p108
    %s111 = sadd.s32 %s110, 1
    %p114 = scmp.eq.s32.totalorder %s20, 1
    %p115 = scmp.ne.s32.totalorder %s110, %s112
    %p116 = scmp.eq.s32.totalorder %s20, 0
    %p117 = por %p115, %p116
    %p118 = scmp.ne.s32.totalorder %s110, %s112
    %p119 = scmp.eq.s32.totalorder %s25, 1
    %p120 = por %p118, %p119
    %p121 = scmp.ne.s32.totalorder %s112, %s113
    %p122 = scmp.eq.s32.totalorder %s25, 0
    %p123 = por %p121, %p122
    %p124 = scmp.ne.s32.totalorder %s112, %s113
    %p125 = scmp.eq.s32.totalorder %s26, 1
    %p126 = por %p124, %p125
    %p128 = scmp.ne.s32.totalorder %s113, %s127
    %p129 = scmp.eq.s32.totalorder %s26, 0
    %p130 = por %p128, %p129
    %s132 = sadd.s32 %s131, 1
    %p135 = scmp.eq.s32.totalorder %s20, 1
    %p136 = scmp.ne.s32.totalorder %s131, %s133
    %p137 = scmp.eq.s32.totalorder %s20, 0
    %p138 = por %p136, %p137
    %p139 = scmp.ne.s32.totalorder %s131, %s133
    %p140 = scmp.eq.s32.totalorder %s25, 1
    %p141 = por %p139, %p140
    %p142 = scmp.ne.s32.totalorder %s133, %s134
    %p143 = scmp.eq.s32.totalorder %s25, 0
    %p144 = por %p142, %p143
    %p145 = scmp.ne.s32.totalorder %s133, %s134
    %p146 = scmp.eq.s32.totalorder %s26, 1
    %p147 = por %p145, %p146
    %p149 = scmp.ne.s32.totalorder %s134, %s148
    %p150 = scmp.eq.s32.totalorder %s26, 0
    %p151 = por %p149, %p150
    %s153 = sadd.s32 %s152, 1
    %p156 = scmp.eq.s32.totalorder %s20, 1
    %p157 = scmp.ne.s32.totalorder %s152, %s154
    %p158 = scmp.eq.s32.totalorder %s20, 0
    %p159 = por %p157, %p158
    %p160 = scmp.ne.s32.totalorder %s152, %s154
    %p161 = scmp.eq.s32.totalorder %s25, 1
    %p162 = por %p160, %p161
    %p163 = scmp.ne.s32.totalorder %s154, %s155
    %p164 = scmp.eq.s32.totalorder %s25, 0
    %p165 = por %p163, %p164
    %p166 = scmp.ne.s32.totalorder %s154, %s155
    %p167 = scmp.eq.s32.totalorder %s26, 1
    %p168 = por %p166, %p167
    %p170 = scmp.ne.s32.totalorder %s155, %s169
    %p171 = scmp.eq.s32.totalorder %s26, 0
    %p172 = por %p170, %p171
    %s174 = sadd.s32 %s173, 1
    %p177 = scmp.eq.s32.totalorder %s20, 1
    %p178 = scmp.ne.s32.totalorder %s173, %s175
    %p179 = scmp.eq.s32.totalorder %s20, 0
    %p180 = por %p178, %p179
    %p181 = scmp.ne.s32.totalorder %s173, %s175
    %p182 = scmp.eq.s32.totalorder %s25, 1
    %p183 = por %p181, %p182
    %p184 = scmp.ne.s32.totalorder %s175, %s176
    %p185 = scmp.eq.s32.totalorder %s25, 0
    %p186 = por %p184, %p185
    %p187 = scmp.ne.s32.totalorder %s175, %s176
    %p188 = scmp.eq.s32.totalorder %s26, 1
    %p189 = por %p187, %p188
    %p191 = scmp.ne.s32.totalorder %s176, %s190
    %p192 = scmp.eq.s32.totalorder %s26, 0
    %p193 = por %p191, %p192
    %s194 = ssub.s32 %s27, %s39
    %s195 = ssub.s32 %s28, %s35
    %s196 = sor.u32 %s194, %s195
    %p197 = scmp.eq.s32.totalorder %s196, 0
    %s199 = sadd.s32 %s198, 1
    %s200 = scalar_select %p197, %s198, %s199
    %p203 = pneg %p197
    %p204 = scmp.eq.s32.totalorder %s20, 1
    %p205 = por %p203, %p204
    %p206 = scmp.ne.s32.totalorder %s198, %s201
    %p207 = scmp.eq.s32.totalorder %s20, 0
    %p208 = por %p206, %p207
    %p209 = scmp.ne.s32.totalorder %s198, %s201
    %p210 = scmp.eq.s32.totalorder %s25, 1
    %p211 = por %p209, %p210
    %p212 = scmp.ne.s32.totalorder %s201, %s202
    %p213 = scmp.eq.s32.totalorder %s25, 0
    %p214 = por %p212, %p213
    %p215 = scmp.ne.s32.totalorder %s201, %s202
    %p216 = scmp.eq.s32.totalorder %s26, 1
    %p217 = por %p215, %p216
    %p219 = scmp.ne.s32.totalorder %s202, %s218
    %p220 = scmp.eq.s32.totalorder %s26, 0
    %p221 = por %p219, %p220
    %p222 = scmp.le.s32.totalorder 1, %s20
    %p223 = scmp.lt.s32.totalorder %s20, 3
    %p224 = pnand %p222, %p223
    %p225 = pneg %p224
    // Predicated region
    $region9: #{tpu_custom_call.1} parent=5 // pred_check
      _
    $region10: #{tpu_custom_call.1} parent=5 // pred_check_branch
      %227 = sbr.rel (%p224) target = $region12
    $region11: #{tpu_custom_call.1} parent=5 // pred_region
      %s228 = ssub.s32 %s20, 1
      // Predicated region
      $region13: #{tpu_custom_call.1} parent=11 // pred_check
        %p229 = pneg %p81
      $region14: #{tpu_custom_call.1} parent=11 // pred_check_branch
        %231 = sbr.rel (%p229) target = $region16
      $region15: #{tpu_custom_call.1} parent=11 // pred_region
        _
      $region16: #{tpu_custom_call.1} parent=11 // pred_fallthru
        _
      // Predicated region
      $region17: #{tpu_custom_call.1} parent=11 // pred_check
        %p232 = pneg %p102
      $region18: #{tpu_custom_call.1} parent=11 // pred_check_branch
        %234 = sbr.rel (%p232) target = $region20
      $region19: #{tpu_custom_call.1} parent=11 // pred_region
        _
      $region20: #{tpu_custom_call.1} parent=11 // pred_fallthru
        _
      // Predicated region
      $region21: #{tpu_custom_call.1} parent=11 // pred_check
        %p235 = pneg %p123
      $region22: #{tpu_custom_call.1} parent=11 // pred_check_branch
        %237 = sbr.rel (%p235) target = $region24
      $region23: #{tpu_custom_call.1} parent=11 // pred_region
        _
      $region24: #{tpu_custom_call.1} parent=11 // pred_fallthru
        _
      // Predicated region
      $region25: #{tpu_custom_call.1} parent=11 // pred_check
        %p238 = pneg %p144
      $region26: #{tpu_custom_call.1} parent=11 // pred_check_branch
        %240 = sbr.rel (%p238) target = $region28
      $region27: #{tpu_custom_call.1} parent=11 // pred_region
        _
      $region28: #{tpu_custom_call.1} parent=11 // pred_fallthru
        _
      // Predicated region
      $region29: #{tpu_custom_call.1} parent=11 // pred_check
        %p241 = pneg %p165
      $region30: #{tpu_custom_call.1} parent=11 // pred_check_branch
        %243 = sbr.rel (%p241) target = $region32
      $region31: #{tpu_custom_call.1} parent=11 // pred_region
        _
      $region32: #{tpu_custom_call.1} parent=11 // pred_fallthru
        _
      // Predicated region
      $region33: #{tpu_custom_call.1} parent=11 // pred_check
        %p244 = pneg %p186
      $region34: #{tpu_custom_call.1} parent=11 // pred_check_branch
        %246 = sbr.rel (%p244) target = $region36
      $region35: #{tpu_custom_call.1} parent=11 // pred_region
        _
      $region36: #{tpu_custom_call.1} parent=11 // pred_fallthru
        _
    $region12: #{tpu_custom_call.1} parent=5 // pred_fallthru
      _
    %p247 = scmp.lt.s32.totalorder %s20, 2
    // Predicated region
    $region37: #{tpu_custom_call.1} parent=5 // pred_check
      %p248 = pneg %p247
    $region38: #{tpu_custom_call.1} parent=5 // pred_check_branch
      %250 = sbr.rel (%p248) target = $region40
    $region39: #{tpu_custom_call.1} parent=5 // pred_region
      // Predicated region
      $region41: #{tpu_custom_call.1} parent=39 // pred_check
        %p251 = pneg %p54
      $region42: #{tpu_custom_call.1} parent=39 // pred_check_branch
        %253 = sbr.rel (%p251) target = $region44
      $region43: #{tpu_custom_call.1} parent=39 // pred_region
        %s254 = smul.u32 2, %s28
        %p255 = scmp.lt.s32.totalorder %s27, 1
        %s256 = scalar_select %p255, %s27, 1
        %p257 = scmp.lt.s32.totalorder %s254, 1
        %s258 = scalar_select %p257, %s254, 1
        %s259 = smul.addr %s256, 2
        %s260 = sadd.s32 %s258, %s259
        %s261 = smul.addr %s260, 4
        %s262 = scalar_lea.vmem %s1, %s261
        %s263 = smul.u32 2, %s28
      $region44: #{tpu_custom_call.1} parent=39 // pred_fallthru
        _
    $region40: #{tpu_custom_call.1} parent=5 // pred_fallthru
      _
    %p264 = scmp.le.s32.totalorder 1, %s20
    %p265 = scmp.lt.s32.totalorder %s20, 3
    %p266 = pnand %p264, %p265
    %p267 = pneg %p266
    // Predicated region
    $region45: #{tpu_custom_call.1} parent=5 // pred_check
      _
    $region46: #{tpu_custom_call.1} parent=5 // pred_check_branch
      %269 = sbr.rel (%p266) target = $region48
    $region47: #{tpu_custom_call.1} parent=5 // pred_region
      %s270 = ssub.s32 %s20, 1
      %s271 = smul.u32 2, %s30
      %p272 = scmp.lt.s32.totalorder %s29, 1
      %s273 = scalar_select %p272, %s29, 1
      %p274 = scmp.lt.s32.totalorder %s271, 1
      %s275 = scalar_select %p274, %s271, 1
      %s276 = smul.addr %s273, 2
      %s277 = sadd.s32 %s275, %s276
      %s278 = smul.addr %s277, 4
      %s279 = scalar_lea.vmem %s1, %s278
      %p280 = pneg %p60
      %p281 = pneg %p57
      %p282 = pneg %p81
      %p283 = pneg %p78
      %p284 = pneg %p102
      %p285 = pneg %p99
      %p286 = pneg %p123
      %p287 = pneg %p120
      %p288 = pneg %p144
      %p289 = pneg %p141
      %p290 = pneg %p165
      %p291 = pneg %p162
      %p292 = pneg %p186
      %p293 = pneg %p183
      %p294 = pneg %p214
      %p295 = pneg %p211
      %s296 = smul.u32 2, %s30
      %p297 = scmp.lt.s32.totalorder %s29, 1
      %s298 = scalar_select %p297, %s29, 1
      %p299 = scmp.lt.s32.totalorder %s296, 1
      %s300 = scalar_select %p299, %s296, 1
      %s301 = smul.addr %s298, 2
      %s302 = sadd.s32 %s300, %s301
      %s303 = smul.addr %s302, 4
      %s304 = scalar_lea.vmem %s8, %s303
      %s305 = smul.u32 2, %s30
      %p306 = scmp.lt.s32.totalorder %s29, 1
      %s307 = scalar_select %p306, %s29, 1
      %p308 = scmp.lt.s32.totalorder %s305, 1
      %s309 = scalar_select %p308, %s305, 1
      %s310 = smul.addr %s307, 2
      %s311 = sadd.s32 %s309, %s310
      %s312 = smul.addr %s311, 4
      %s313 = scalar_lea.vmem %s1, %s312
      %s314 = smul.u32 2, %s30
      %s315 = smul.u32 2, %s30
      %p316 = scmp.lt.s32.totalorder %s29, 1
      %s317 = scalar_select %p316, %s29, 1
      %p318 = scmp.lt.s32.totalorder %s315, 1
      %s319 = scalar_select %p318, %s315, 1
      %s320 = smul.addr %s317, 2
      %s321 = sadd.s32 %s319, %s320
      %s322 = smul.addr %s321, 4
      %s323 = scalar_lea.vmem %s8, %s322
      %s324 = smul.u32 2, %s30
      %v325 = vld [vmem:[%s313] sm:$0xff]
      %v326 = vld [vmem:[%s2] sm:$0xff]
      %v327 = vld [vmem:[%s2 + $0x8] sm:$0xff]
      %v328 = vld [vmem:[%s2 + $0x10] sm:$0xff]
      %v329 = vld [vmem:[%s2 + $0x18] sm:$0xff]
      %v330 = vld [vmem:[%s3] sm:$0xff]
      %v331 = vld [vmem:[%s3 + $0x8] sm:$0xff]
      %v332 = vld [vmem:[%s3 + $0x10] sm:$0xff]
      %v333 = vld [vmem:[%s3 + $0x18] sm:$0xff]
      %335 = vset.pattern.permute.xlu0 0
      %336 = vperm.xlu0 %335, %v330
      %v337 = vpop.permute.xlu0 %336
      %340 = vset.pattern.permute.xlu0 0
      %341 = vperm.xlu0 %340, %v331
      %v342 = vpop.permute.xlu0 %341
      %345 = vset.pattern.permute.xlu0 0
      %346 = vperm.xlu0 %345, %v332
      %v347 = vpop.permute.xlu0 %346
      %350 = vset.pattern.permute.xlu0 0
      %351 = vperm.xlu0 %350, %v333
      %v352 = vpop.permute.xlu0 %351
      %v355 = vcombine.high %v325, %v325
      %vm356 = vcmask 31744
      %v358 = vsel %vm356, %v326, 0
      %v361 = vsel %vm356, %v327, 0
      %v364 = vsel %vm356, %v328, 0
      %v367 = vsel %vm356, %v329, 0
      %vm369 = vcmask 1043456
      %v370 = vsel %vm369, %v325, 0
      %v372 = vsel %vm369, %v355, 0
      %374 = vmatprep.subr.mxu0 %v372
      %375 = vmatpush1.msra.mxu0 %v370
      %376 = vmatprep.subr.mxu0 0.0
      %377 = vmatpush1.msra.mxu0 0.0
      %378 = vmatprep.subr.mxu0 0.0
      %379 = vmatpush1.msra.mxu0 0.0
      %380 = vmatprep.subr.mxu0 0.0
      %381 = vmatpush1.msra.mxu0 0.0
      %382 = vmatprep.subr.mxu0 0.0
      %383 = vmatpush1.msra.mxu0 0.0
      %384 = vmatprep.subr.mxu0 0.0
      %385 = vmatpush1.msra.mxu0 0.0
      %386 = vmatprep.subr.mxu0 0.0
      %387 = vmatpush1.msra.mxu0 0.0
      %388 = vmatprep.subr.mxu0 0.0
      %389 = vmatpush1.msra.mxu0 0.0
      %390 = vmatprep.subr.mxu0 0.0
      %391 = vmatpush1.msra.mxu0 0.0
      %392 = vmatprep.subr.mxu0 0.0
      %393 = vmatpush1.msra.mxu0 0.0
      %394 = vmatprep.subr.mxu0 0.0
      %395 = vmatpush1.msra.mxu0 0.0
      %396 = vmatprep.subr.mxu0 0.0
      %397 = vmatpush1.msra.mxu0 0.0
      %398 = vmatprep.subr.mxu0 0.0
      %399 = vmatpush1.msra.mxu0 0.0
      %400 = vmatprep.subr.mxu0 0.0
      %401 = vmatpush1.msra.mxu0 0.0
      %402 = vmatprep.subr.mxu0 0.0
      %403 = vmatpush1.msra.mxu0 0.0
      %404 = vmatprep.subr.mxu0 0.0
      %405 = vmatpush1.msra.mxu0 0.0
      %406 = vmatprep.subr.mxu0 0.0
      %407 = vmatpush1.msra.mxu0 0.0
      %408 = vmatprep.subr.mxu0 0.0
      %409 = vmatpush1.msra.mxu0 0.0
      %410 = vmatprep.subr.mxu0 0.0
      %411 = vmatpush1.msra.mxu0 0.0
      %412 = vmatprep.subr.mxu0 0.0
      %413 = vmatpush1.msra.mxu0 0.0
      %414 = vmatprep.subr.mxu0 0.0
      %415 = vmatpush1.msra.mxu0 0.0
      %416 = vmatprep.subr.mxu0 0.0
      %417 = vmatpush1.msra.mxu0 0.0
      %418 = vmatprep.subr.mxu0 0.0
      %419 = vmatpush1.msra.mxu0 0.0
      %420 = vmatprep.subr.mxu0 0.0
      %421 = vmatpush1.msra.mxu0 0.0
      %422 = vmatprep.subr.mxu0 0.0
      %423 = vmatpush1.msra.mxu0 0.0
      %424 = vmatprep.subr.mxu0 0.0
      %425 = vmatpush1.msra.mxu0 0.0
      %426 = vmatprep.subr.mxu0 0.0
      %427 = vmatpush1.msra.mxu0 0.0
      %428 = vmatprep.subr.mxu0 0.0
      %429 = vmatpush1.msra.mxu0 0.0
      %430 = vmatprep.subr.mxu0 0.0
      %431 = vmatpush1.msra.mxu0 0.0
      %432 = vmatprep.subr.mxu0 0.0
      %433 = vmatpush1.msra.mxu0 0.0
      %434 = vmatprep.subr.mxu0 0.0
      %435 = vmatpush1.msra.mxu0 0.0
      %436 = vmatprep.subr.mxu0 0.0
      %437 = vmatpush1.msra.mxu0 0.0
      %438 = vmatprep.mubr.f32.mxu0 0.0
      %439 = vmatmul.mubr.f32.gmra.mrb[0].mxu0 %v358
      %v440 = vpop.f32.mrb[0].mxu0
      %v441 = vadd.f32 %v337, %v440
      %v442 = vpop.f32.mrb[0].mxu0
      %v443 = vadd.f32 %v337, %v442
      %444 = vmatprep.mubr.f32.mxu0 0.0
      %445 = vmatmul.mubr.f32.gmra.mrb[0].mxu0 %v361
      %v446 = vpop.f32.mrb[0].mxu0
      %v447 = vadd.f32 %v342, %v446
      %v448 = vpop.f32.mrb[0].mxu0
      %v449 = vadd.f32 %v342, %v448
      %450 = vmatprep.mubr.f32.mxu0 0.0
      %451 = vmatmul.mubr.f32.gmra.mrb[0].mxu0 %v364
      %v452 = vpop.f32.mrb[0].mxu0
      %v453 = vadd.f32 %v347, %v452
      %v454 = vpop.f32.mrb[0].mxu0
      %v455 = vadd.f32 %v347, %v454
      %456 = vmatprep.mubr.f32.mxu0 0.0
      %457 = vmatmul.mubr.f32.gmra.mrb[0].mxu0 %v367
      %v458 = vpop.f32.mrb[0].mxu0
      %v459 = vadd.f32 %v352, %v458
      %v460 = vpop.f32.mrb[0].mxu0
      %v461 = vadd.f32 %v352, %v460
      %462 = vdwg.mxu0
      %s463 = sld [smem:[#allocation3]]
      %vm464 = vcmp.gt.f32.partialorder %v441, 0.0
      %vm465 = vcmp.gt.f32.partialorder %v443, 0.0
      %vm466 = vcmp.gt.f32.partialorder %v447, 0.0
      %vm467 = vcmp.gt.f32.partialorder %v449, 0.0
      %vm468 = vcmp.gt.f32.partialorder %v453, 0.0
      %vm469 = vcmp.gt.f32.partialorder %v455, 0.0
      %vm470 = vcmp.gt.f32.partialorder %v459, 0.0
      %vm471 = vcmp.gt.f32.partialorder %v461, 0.0
      %v472 = vstv %s463
      %v473 = vmul.f32 %v472, %v441
      %v474 = vmul.f32 %v472, %v443
      %v475 = vmul.f32 %v472, %v447
      %v476 = vmul.f32 %v472, %v449
      %v477 = vmul.f32 %v472, %v453
      %v478 = vmul.f32 %v472, %v455
      %v479 = vmul.f32 %v472, %v459
      %v480 = vmul.f32 %v472, %v461
      %v481 = vsel %vm464, %v441, %v473
      %v482 = vsel %vm465, %v443, %v474
      %v483 = vsel %vm466, %v447, %v475
      %v484 = vsel %vm467, %v449, %v476
      %v485 = vsel %vm468, %v453, %v477
      %v486 = vsel %vm469, %v455, %v478
      %v487 = vsel %vm470, %v459, %v479
      %v488 = vsel %vm471, %v461, %v480
      %v489 = vld [vmem:[%s4] sm:$0xff]
      %v490 = vld [vmem:[%s4 + $0x8] sm:$0xff]
      %v491 = vld [vmem:[%s4 + $0x10] sm:$0xff]
      %v492 = vld [vmem:[%s4 + $0x18] sm:$0xff]
      %v493 = vld [vmem:[%s5] sm:$0xff]
      %v494 = vld [vmem:[%s5 + $0x8] sm:$0xff]
      %v495 = vld [vmem:[%s5 + $0x10] sm:$0xff]
      %v496 = vld [vmem:[%s5 + $0x18] sm:$0xff]
      %498 = vset.pattern.permute.xlu0 0
      %499 = vperm.xlu0 %498, %v493
      %v500 = vpop.permute.xlu0 %499
      %503 = vset.pattern.permute.xlu0 0
      %504 = vperm.xlu0 %503, %v494
      %v505 = vpop.permute.xlu0 %504
      %508 = vset.pattern.permute.xlu0 0
      %509 = vperm.xlu0 %508, %v495
      %v510 = vpop.permute.xlu0 %509
      %513 = vset.pattern.permute.xlu0 0
      %514 = vperm.xlu0 %513, %v496
      %v515 = vpop.permute.xlu0 %514
      %vm517 = vcmask 261120
      %v519 = vsel %vm517, %v489, 0
      %v522 = vsel %vm517, %v490, 0
      %v525 = vsel %vm517, %v491, 0
      %v528 = vsel %vm517, %v492, 0
      %530 = vmatprep.subr.mxu0 %v482
      %531 = vmatpush1.msra.mxu0 %v481
      %532 = vmatprep.subr.mxu0 %v484
      %533 = vmatpush1.msra.mxu0 %v483
      %534 = vmatprep.subr.mxu0 %v486
      %535 = vmatpush1.msra.mxu0 %v485
      %536 = vmatprep.subr.mxu0 %v488
      %537 = vmatpush1.msra.mxu0 %v487
      %538 = vmatprep.subr.mxu0 0.0
      %539 = vmatpush1.msra.mxu0 0.0
      %540 = vmatprep.subr.mxu0 0.0
      %541 = vmatpush1.msra.mxu0 0.0
      %542 = vmatprep.subr.mxu0 0.0
      %543 = vmatpush1.msra.mxu0 0.0
      %544 = vmatprep.subr.mxu0 0.0
      %545 = vmatpush1.msra.mxu0 0.0
      %546 = vmatprep.subr.mxu0 0.0
      %547 = vmatpush1.msra.mxu0 0.0
      %548 = vmatprep.subr.mxu0 0.0
      %549 = vmatpush1.msra.mxu0 0.0
      %550 = vmatprep.subr.mxu0 0.0
      %551 = vmatpush1.msra.mxu0 0.0
      %552 = vmatprep.subr.mxu0 0.0
      %553 = vmatpush1.msra.mxu0 0.0
      %554 = vmatprep.subr.mxu0 0.0
      %555 = vmatpush1.msra.mxu0 0.0
      %556 = vmatprep.subr.mxu0 0.0
      %557 = vmatpush1.msra.mxu0 0.0
      %558 = vmatprep.subr.mxu0 0.0
      %559 = vmatpush1.msra.mxu0 0.0
      %560 = vmatprep.subr.mxu0 0.0
      %561 = vmatpush1.msra.mxu0 0.0
      %562 = vmatprep.subr.mxu0 0.0
      %563 = vmatpush1.msra.mxu0 0.0
      %564 = vmatprep.subr.mxu0 0.0
      %565 = vmatpush1.msra.mxu0 0.0
      %566 = vmatprep.subr.mxu0 0.0
      %567 = vmatpush1.msra.mxu0 0.0
      %568 = vmatprep.subr.mxu0 0.0
      %569 = vmatpush1.msra.mxu0 0.0
      %570 = vmatprep.subr.mxu0 0.0
      %571 = vmatpush1.msra.mxu0 0.0
      %572 = vmatprep.subr.mxu0 0.0
      %573 = vmatpush1.msra.mxu0 0.0
      %574 = vmatprep.subr.mxu0 0.0
      %575 = vmatpush1.msra.mxu0 0.0
      %576 = vmatprep.subr.mxu0 0.0
      %577 = vmatpush1.msra.mxu0 0.0
      %578 = vmatprep.subr.mxu0 0.0
      %579 = vmatpush1.msra.mxu0 0.0
      %580 = vmatprep.subr.mxu0 0.0
      %581 = vmatpush1.msra.mxu0 0.0
      %582 = vmatprep.subr.mxu0 0.0
      %583 = vmatpush1.msra.mxu0 0.0
      %584 = vmatprep.subr.mxu0 0.0
      %585 = vmatpush1.msra.mxu0 0.0
      %586 = vmatprep.subr.mxu0 0.0
      %587 = vmatpush1.msra.mxu0 0.0
      %588 = vmatprep.subr.mxu0 0.0
      %589 = vmatpush1.msra.mxu0 0.0
      %590 = vmatprep.subr.mxu0 0.0
      %591 = vmatpush1.msra.mxu0 0.0
      %592 = vmatprep.subr.mxu0 0.0
      %593 = vmatpush1.msra.mxu0 0.0
      %594 = vmatprep.mubr.f32.mxu0 0.0
      %595 = vmatmul.mubr.f32.gmra.mrb[0].mxu0 %v519
      %v596 = vpop.f32.mrb[0].mxu0
      %v597 = vadd.f32 %v500, %v596
      %v598 = vpop.f32.mrb[0].mxu0
      %v599 = vadd.f32 %v500, %v598
      %600 = vmatprep.mubr.f32.mxu0 0.0
      %601 = vmatmul.mubr.f32.gmra.mrb[0].mxu0 %v522
      %v602 = vpop.f32.mrb[0].mxu0
      %v603 = vadd.f32 %v505, %v602
      %v604 = vpop.f32.mrb[0].mxu0
      %v605 = vadd.f32 %v505, %v604
      %606 = vmatprep.mubr.f32.mxu0 0.0
      %607 = vmatmul.mubr.f32.gmra.mrb[0].mxu0 %v525
      %v608 = vpop.f32.mrb[0].mxu0
      %v609 = vadd.f32 %v510, %v608
      %v610 = vpop.f32.mrb[0].mxu0
      %v611 = vadd.f32 %v510, %v610
      %612 = vmatprep.mubr.f32.mxu0 0.0
      %613 = vmatmul.mubr.f32.gmra.mrb[0].mxu0 %v528
      %v614 = vpop.f32.mrb[0].mxu0
      %v615 = vadd.f32 %v515, %v614
      %v616 = vpop.f32.mrb[0].mxu0
      %v617 = vadd.f32 %v515, %v616
      %618 = vdwg.mxu0
      %s619 = sld [smem:[#allocation3 + $0x1]]
      %vm620 = vcmp.gt.f32.partialorder %v597, 0.0
      %vm621 = vcmp.gt.f32.partialorder %v599, 0.0
      %vm622 = vcmp.gt.f32.partialorder %v603, 0.0
      %vm623 = vcmp.gt.f32.partialorder %v605, 0.0
      %vm624 = vcmp.gt.f32.partialorder %v609, 0.0
      %vm625 = vcmp.gt.f32.partialorder %v611, 0.0
      %vm626 = vcmp.gt.f32.partialorder %v615, 0.0
      %vm627 = vcmp.gt.f32.partialorder %v617, 0.0
      %v628 = vstv %s619
      %v629 = vmul.f32 %v628, %v597
      %v630 = vmul.f32 %v628, %v599
      %v631 = vmul.f32 %v628, %v603
      %v632 = vmul.f32 %v628, %v605
      %v633 = vmul.f32 %v628, %v609
      %v634 = vmul.f32 %v628, %v611
      %v635 = vmul.f32 %v628, %v615
      %v636 = vmul.f32 %v628, %v617
      %v637 = vsel %vm620, %v597, %v629
      %v638 = vsel %vm621, %v599, %v630
      %v639 = vsel %vm622, %v603, %v631
      %v640 = vsel %vm623, %v605, %v632
      %v641 = vsel %vm624, %v609, %v633
      %v642 = vsel %vm625, %v611, %v634
      %v643 = vsel %vm626, %v615, %v635
      %v644 = vsel %vm627, %v617, %v636
      %v645 = vld [vmem:[%s6] sm:$0x7]
      %v646 = vld [vmem:[%s7] sm:$0x7]
      %648 = vset.pattern.permute.xlu0 0
      %649 = vperm.xlu0 %648, %v646
      %v650 = vpop.permute.xlu0 %649
      %v653 = vsel %vm517, %v645, 0
      %655 = vmatprep.subr.mxu0 %v638
      %656 = vmatpush1.msra.mxu0 %v637
      %657 = vmatprep.subr.mxu0 %v640
      %658 = vmatpush1.msra.mxu0 %v639
      %659 = vmatprep.subr.mxu0 %v642
      %660 = vmatpush1.msra.mxu0 %v641
      %661 = vmatprep.subr.mxu0 %v644
      %662 = vmatpush1.msra.mxu0 %v643
      %663 = vmatprep.subr.mxu0 0.0
      %664 = vmatpush1.msra.mxu0 0.0
      %665 = vmatprep.subr.mxu0 0.0
      %666 = vmatpush1.msra.mxu0 0.0
      %667 = vmatprep.subr.mxu0 0.0
      %668 = vmatpush1.msra.mxu0 0.0
      %669 = vmatprep.subr.mxu0 0.0
      %670 = vmatpush1.msra.mxu0 0.0
      %671 = vmatprep.subr.mxu0 0.0
      %672 = vmatpush1.msra.mxu0 0.0
      %673 = vmatprep.subr.mxu0 0.0
      %674 = vmatpush1.msra.mxu0 0.0
      %675 = vmatprep.subr.mxu0 0.0
      %676 = vmatpush1.msra.mxu0 0.0
      %677 = vmatprep.subr.mxu0 0.0
      %678 = vmatpush1.msra.mxu0 0.0
      %679 = vmatprep.subr.mxu0 0.0
      %680 = vmatpush1.msra.mxu0 0.0
      %681 = vmatprep.subr.mxu0 0.0
      %682 = vmatpush1.msra.mxu0 0.0
      %683 = vmatprep.subr.mxu0 0.0
      %684 = vmatpush1.msra.mxu0 0.0
      %685 = vmatprep.subr.mxu0 0.0
      %686 = vmatpush1.msra.mxu0 0.0
      %687 = vmatprep.subr.mxu0 0.0
      %688 = vmatpush1.msra.mxu0 0.0
      %689 = vmatprep.subr.mxu0 0.0
      %690 = vmatpush1.msra.mxu0 0.0
      %691 = vmatprep.subr.mxu0 0.0
      %692 = vmatpush1.msra.mxu0 0.0
      %693 = vmatprep.subr.mxu0 0.0
      %694 = vmatpush1.msra.mxu0 0.0
      %695 = vmatprep.subr.mxu0 0.0
      %696 = vmatpush1.msra.mxu0 0.0
      %697 = vmatprep.subr.mxu0 0.0
      %698 = vmatpush1.msra.mxu0 0.0
      %699 = vmatprep.subr.mxu0 0.0
      %700 = vmatpush1.msra.mxu0 0.0
      %701 = vmatprep.subr.mxu0 0.0
      %702 = vmatpush1.msra.mxu0 0.0
      %703 = vmatprep.subr.mxu0 0.0
      %704 = vmatpush1.msra.mxu0 0.0
      %705 = vmatprep.subr.mxu0 0.0
      %706 = vmatpush1.msra.mxu0 0.0
      %707 = vmatprep.subr.mxu0 0.0
      %708 = vmatpush1.msra.mxu0 0.0
      %709 = vmatprep.subr.mxu0 0.0
      %710 = vmatpush1.msra.mxu0 0.0
      %711 = vmatprep.subr.mxu0 0.0
      %712 = vmatpush1.msra.mxu0 0.0
      %713 = vmatprep.subr.mxu0 0.0
      %714 = vmatpush1.msra.mxu0 0.0
      %715 = vmatprep.subr.mxu0 0.0
      %716 = vmatpush1.msra.mxu0 0.0
      %717 = vmatprep.subr.mxu0 0.0
      %718 = vmatpush1.msra.mxu0 0.0
      %719 = vmatprep.mubr.f32.mxu0 0.0
      %720 = vmatmul.mubr.f32.gmra.mrb[0].mxu0 %v653
      %v721 = vpop.f32.mrb[0].mxu0
      %v722 = vadd.f32 %v650, %v721
      %v723 = vpop.f32.mrb[0].mxu0
      %v724 = vadd.f32 %v650, %v723
      %725 = vdwg.mxu0
      %v728 = vcombine.low %v722, %v724
      %730 = vst [vmem:[%s323] sm:$0x77] %v728
      %s731 = smul.u32 2, %s30
      %p732 = scmp.lt.s32.totalorder %s29, 1
      %s733 = scalar_select %p732, %s29, 1
      %p734 = scmp.lt.s32.totalorder %s731, 1
      %s735 = scalar_select %p734, %s731, 1
      %s736 = smul.addr %s733, 2
      %s737 = sadd.s32 %s735, %s736
      %s738 = smul.addr %s737, 4
      %s739 = scalar_lea.vmem %s8, %s738
      // Predicated region
      $region49: #{tpu_custom_call.1} parent=47 // pred_check
        %p740 = pneg %p211
      $region50: #{tpu_custom_call.1} parent=47 // pred_check_branch
        %742 = sbr.rel (%p740) target = $region52
      $region51: #{tpu_custom_call.1} parent=47 // pred_region
        %s743 = smul.u32 2, %s30
      $region52: #{tpu_custom_call.1} parent=47 // pred_fallthru
        _
    $region48: #{tpu_custom_call.1} parent=5 // pred_fallthru
      _
    %p744 = scmp.le.s32.totalorder 2, %s20
    // Predicated region
    $region53: #{tpu_custom_call.1} parent=5 // pred_check
      %p745 = pneg %p744
    $region54: #{tpu_custom_call.1} parent=5 // pred_check_branch
      %747 = sbr.rel (%p745) target = $region56
    $region55: #{tpu_custom_call.1} parent=5 // pred_region
      %s748 = ssub.s32 %s20, 2
      // Predicated region
      $region57: #{tpu_custom_call.1} parent=55 // pred_check
        %p749 = pneg %p217
      $region58: #{tpu_custom_call.1} parent=55 // pred_check_branch
        %751 = sbr.rel (%p749) target = $region60
      $region59: #{tpu_custom_call.1} parent=55 // pred_region
        %s752 = smul.u32 2, %s32
        %p753 = scmp.lt.s32.totalorder %s31, 1
        %s754 = scalar_select %p753, %s31, 1
        %p755 = scmp.lt.s32.totalorder %s752, 1
        %s756 = scalar_select %p755, %s752, 1
        %s757 = smul.addr %s754, 2
        %s758 = sadd.s32 %s756, %s757
        %s759 = smul.addr %s758, 4
        %s760 = scalar_lea.vmem %s8, %s759
      $region60: #{tpu_custom_call.1} parent=55 // pred_fallthru
        _
    $region56: #{tpu_custom_call.1} parent=5 // pred_fallthru
      _
  $region6: #{tpu_custom_call.1} parent=0 // loop_footer
    %s24 = sadd.s32 1, %s20
  $region7: #{tpu_custom_call.1} parent=0 // loop_footer_branch
    %19 = sbr.rel target = $region3
  $region8: #{tpu_custom_call.1} parent=0 // loop_exit
    _

</llo_original>
